<compile_context>
chip_gen: v7x
topology: tpu7x:2x2x1
jax: 0.10.0
libtpu: 0.0.40
codegen_flags: <defaults>
</compile_context>

<pallas_src>
import functools
import math

import jax
import jax.numpy as jnp
from jax.experimental import pallas as pl
from jax.experimental.pallas import tpu as pltpu

D_MODEL = 32
N_HEADS = 4
D_HEAD = D_MODEL // N_HEADS
D_FF = 64
SEQ = 8
BATCH = 2
EPS = 1e-5
MXU_DTYPE = jnp.bfloat16          # MXU operand dtype; accumulation is f32

# weight-slab row offsets (each weight gets its own lane-0-aligned row block)
ROW_QKV = 0
ROW_WO = D_MODEL
ROW_W1 = 2 * D_MODEL
ROW_W2 = 3 * D_MODEL
W_SLAB_ROWS = 3 * D_MODEL + D_FF   # 160
VEC_ROWS = 8                       # (8, 128) f32 bias / LayerNorm slab


def _layer_norm(h, g, b):
    mu = jnp.mean(h, axis=-1, keepdims=True)
    var = jnp.mean((h - mu) ** 2, axis=-1, keepdims=True)
    return (h - mu) * jax.lax.rsqrt(var + EPS) * g + b


def encoder_layer_kernel(x_ref, w_ref, vec_ref, out_ref, *, tile_b, seq):
    d, nh, dh, dff = D_MODEL, N_HEADS, D_HEAD, D_FF
    n = tile_b * seq

    x = x_ref[...]                                    # (n, D) f32
    w = w_ref[...]                                    # (160, 128) bf16 slab
    vecs = vec_ref[...]                               # (8, 128) f32 slab

    # ---- unpack weight slab (row slices, lane-0 aligned) --------------------
    w_qkv = w[ROW_QKV:ROW_QKV + d, 0:3 * d]           # (D, 3D)  [Wq|Wk|Wv]
    w_o = w[ROW_WO:ROW_WO + d, 0:d]                   # (D, D)
    w_1 = w[ROW_W1:ROW_W1 + d, 0:dff]                 # (D, D_FF)
    w_2 = w[ROW_W2:ROW_W2 + dff, 0:d]                 # (D_FF, D)

    # ---- unpack bias / LayerNorm slab ---------------------------------------
    b_qkv = vecs[0:1, 0:3 * d]
    b_o = vecs[0:1, 3 * d:4 * d]
    b_1 = vecs[1:2, 0:dff]
    b_2 = vecs[1:2, dff:dff + d]
    ln1_g = vecs[2:3, 0 * d:1 * d]
    ln1_b = vecs[2:3, 1 * d:2 * d]
    ln2_g = vecs[2:3, 2 * d:3 * d]
    ln2_b = vecs[2:3, 3 * d:4 * d]

    # ---- fused Q/K/V projection: one MXU push over all rows in the tile -----
    x_bf = x.astype(MXU_DTYPE)                        # single hoisted cast
    qkv = jnp.dot(x_bf, w_qkv,
                  preferred_element_type=jnp.float32) + b_qkv   # (n, 3D) f32
    qkv_bf = qkv.astype(MXU_DTYPE)                    # single hoisted cast

    # ---- fused multi-head attention: one einsum / one softmax / one PV ------
    def split_heads(m):                               # (n, D) -> (H*Bt, S, Dh)
        m3 = m.reshape(tile_b, seq, d)
        return jnp.concatenate(
            [m3[:, :, h * dh:(h + 1) * dh] for h in range(nh)], axis=0)

    qh = split_heads(qkv_bf[:, 0:d])
    kh = split_heads(qkv_bf[:, d:2 * d])
    vh = split_heads(qkv_bf[:, 2 * d:3 * d])

    scale = 1.0 / math.sqrt(dh)
    s = jnp.einsum("bqd,bkd->bqk", qh, kh,
                   preferred_element_type=jnp.float32) * scale  # (H*Bt, S, S)
    s = s - jnp.max(s, axis=-1, keepdims=True)
    p = jnp.exp(s)
    # approx reciprocal (EUP slot); rows of p sum to 1 only approximately.
    p = p * pl.reciprocal(jnp.sum(p, axis=-1, keepdims=True), approx=True)

    o = jnp.einsum("bqk,bkd->bqd", p.astype(MXU_DTYPE), vh,
                   preferred_element_type=jnp.float32)          # (H*Bt, S, Dh)

    # lane-concat heads back to (Bt, S, D), then ONE output-projection matmul
    o4 = o.reshape(nh, tile_b, seq, dh)
    o_cat = jnp.concatenate([o4[h] for h in range(nh)], axis=-1)  # (Bt, S, D)
    attn = jnp.dot(o_cat.reshape(n, d).astype(MXU_DTYPE), w_o,
                   preferred_element_type=jnp.float32) + b_o      # (n, D)

    # ---- residual + LayerNorm 1 (f32) ---------------------------------------
    h1 = _layer_norm(x + attn, ln1_g, ln1_b)

    # ---- position-wise feed-forward -----------------------------------------
    f = jnp.dot(h1.astype(MXU_DTYPE), w_1,
                preferred_element_type=jnp.float32) + b_1
    f = jnp.maximum(f, 0.0)
    f = jnp.dot(f.astype(MXU_DTYPE), w_2,
                preferred_element_type=jnp.float32) + b_2

    # ---- residual + LayerNorm 2 (f32) ---------------------------------------
    out_ref[...] = _layer_norm(h1 + f, ln2_g, ln2_b)


def _pad_cols(a, cols=128):
    return jnp.pad(a, ((0, 0), (0, cols - a.shape[1])))


def _pack_params(p):
    """Pack 16 parameters into 2 lane-dense slabs (weights bf16, vectors f32)."""
    # packing assumptions (previously silent; now asserted)
    assert 4 * D_MODEL == 128, "bias/LN slab packing assumes 4*D_MODEL == 128"
    assert D_FF + D_MODEL <= 128, "b1|b2 packing assumes D_FF + D_MODEL <= 128"
    assert D_MODEL % N_HEADS == 0
    assert W_SLAB_ROWS % 8 == 0

    w_slab = jnp.concatenate([
        _pad_cols(jnp.concatenate([p["wq"], p["wk"], p["wv"]], axis=1)),  # rows 0:32
        _pad_cols(p["wo"]),                                               # rows 32:64
        _pad_cols(p["w1"]),                                               # rows 64:96
        _pad_cols(p["w2"]),                                               # rows 96:160
    ], axis=0).astype(MXU_DTYPE)                                          # (160, 128)

    row0 = jnp.concatenate([p["bq"], p["bk"], p["bv"], p["bo"]], axis=1)  # (1,128)
    row1 = _pad_cols(jnp.concatenate([p["b1"], p["b2"]], axis=1))         # (1,128)
    row2 = jnp.concatenate([p["ln1_g"], p["ln1_b"], p["ln2_g"], p["ln2_b"]],
                           axis=1)                                        # (1,128)
    vec_slab = jnp.concatenate(
        [row0, row1, row2, jnp.zeros((VEC_ROWS - 3, 128), jnp.float32)], axis=0)
    return w_slab, vec_slab


def _pick_batch_tile(batch, seq, target_rows=256):
    """Largest divisor of `batch` whose row-tile (tb*seq) stays <= target_rows."""
    best = 1
    for tb in range(1, batch + 1):
        if batch % tb == 0 and tb * seq <= target_rows:
            best = tb
    return best


@jax.jit
def encoder_layer(x, params):
    """x: [B, S, D] float32. params: dict of weights (see init_params)."""
    B, S, D = x.shape
    assert D == D_MODEL
    w_slab, vec_slab = _pack_params(params)

    tb = _pick_batch_tile(B, S)
    if (B // tb) > 1 and (tb * S) % 8 != 0:
        tb = B                       # fall back to a single full-array block
    grid = B // tb
    n_tile = tb * S

    x_flat = x.reshape(B * S, D)
    kernel = functools.partial(encoder_layer_kernel, tile_b=tb, seq=S)

    out_flat = pl.pallas_call(
        kernel,
        out_shape=jax.ShapeDtypeStruct((B * S, D), jnp.float32),
        grid=(grid,),
        in_specs=[
            pl.BlockSpec((n_tile, D), lambda i: (i, 0)),            # activations
            pl.BlockSpec((W_SLAB_ROWS, 128), lambda i: (0, 0)),     # weight slab
            pl.BlockSpec((VEC_ROWS, 128), lambda i: (0, 0)),        # bias/LN slab
        ],
        out_specs=pl.BlockSpec((n_tile, D), lambda i: (i, 0)),
        compiler_params=pltpu.CompilerParams(
            dimension_semantics=("parallel",)),   # shard row-tiles over v7x TCs
    )(x_flat, w_slab, vec_slab)
    return out_flat.reshape(B, S, D)


def init_params(key):
    """Deterministic synthetic parameters (canonical encoder-layer shapes)."""
    ks = jax.random.split(key, 8)
    s = 0.02
    return {
        "wq": s * jax.random.normal(ks[0], (D_MODEL, D_MODEL), jnp.float32),
        "wk": s * jax.random.normal(ks[1], (D_MODEL, D_MODEL), jnp.float32),
        "wv": s * jax.random.normal(ks[2], (D_MODEL, D_MODEL), jnp.float32),
        "wo": s * jax.random.normal(ks[3], (D_MODEL, D_MODEL), jnp.float32),
        "w1": s * jax.random.normal(ks[4], (D_MODEL, D_FF), jnp.float32),
        "w2": s * jax.random.normal(ks[5], (D_FF, D_MODEL), jnp.float32),
        "bq": jnp.zeros((1, D_MODEL), jnp.float32),
        "bk": jnp.zeros((1, D_MODEL), jnp.float32),
        "bv": jnp.zeros((1, D_MODEL), jnp.float32),
        "bo": jnp.zeros((1, D_MODEL), jnp.float32),
        "b1": jnp.zeros((1, D_FF), jnp.float32),
        "b2": jnp.zeros((1, D_MODEL), jnp.float32),
        "ln1_g": jnp.ones((1, D_MODEL), jnp.float32),
        "ln1_b": jnp.zeros((1, D_MODEL), jnp.float32),
        "ln2_g": jnp.ones((1, D_MODEL), jnp.float32),
        "ln2_b": jnp.zeros((1, D_MODEL), jnp.float32),
    }


def encoder_layer_ref(x, p, mxu_dtype=jnp.float32):
    """Pure-JAX reference; `mxu_dtype` mirrors the kernel's matmul-operand cast."""
    def mm(a, w):
        return jnp.dot(a.astype(mxu_dtype), w.astype(mxu_dtype),
                       preferred_element_type=jnp.float32)

    B, S, D = x.shape
    xf = x.reshape(B * S, D)
    q = (mm(xf, p["wq"]) + p["bq"]).reshape(B, S, N_HEADS, D_HEAD)
    k = (mm(xf, p["wk"]) + p["bk"]).reshape(B, S, N_HEADS, D_HEAD)
    v = (mm(xf, p["wv"]) + p["bv"]).reshape(B, S, N_HEADS, D_HEAD)
    s = jnp.einsum("bqhd,bkhd->bhqk", q.astype(mxu_dtype), k.astype(mxu_dtype),
                   preferred_element_type=jnp.float32) / math.sqrt(D_HEAD)
    a = jax.nn.softmax(s, axis=-1)
    o = jnp.einsum("bhqk,bkhd->bqhd", a.astype(mxu_dtype), v.astype(mxu_dtype),
                   preferred_element_type=jnp.float32).reshape(B * S, D)
    o = mm(o, p["wo"]) + p["bo"]
    h1 = _layer_norm(xf + o, p["ln1_g"], p["ln1_b"])
    f = mm(jnp.maximum(mm(h1, p["w1"]) + p["b1"], 0.0), p["w2"]) + p["b2"]
    return _layer_norm(h1 + f, p["ln2_g"], p["ln2_b"]).reshape(B, S, D)


if __name__ == "__main__":
    key = jax.random.PRNGKey(0)
    kx, kp, kx2 = jax.random.split(key, 3)
    params = init_params(kp)

    # 1) canonical small shape (B=2, S=8, D=32) — single block, grid=1
    x = jax.random.normal(kx, (BATCH, SEQ, D_MODEL), jnp.float32)
    out = jax.block_until_ready(encoder_layer(x, params))
    assert out.shape == (BATCH, SEQ, D_MODEL)

    ref_bf16 = encoder_layer_ref(x, params, mxu_dtype=MXU_DTYPE)
    assert jnp.allclose(out, ref_bf16, atol=5e-3, rtol=5e-3), \
        "mismatch vs bf16-MXU reference"
    ref_f32 = encoder_layer_ref(x, params, mxu_dtype=jnp.float32)
    assert jnp.allclose(out, ref_f32, atol=3e-2, rtol=3e-2), \
        "mismatch vs f32 reference"

    # 2) larger batch exercising the row-tile grid (2 tiles x 256 rows,
    #    parallel axis -> both TensorCores on v7x)
    xb = jax.random.normal(kx2, (64, SEQ, D_MODEL), jnp.float32)
    out_b = jax.block_until_ready(encoder_layer(xb, params))
    ref_b = encoder_layer_ref(xb, params, mxu_dtype=MXU_DTYPE)
    assert jnp.allclose(out_b, ref_b, atol=5e-3, rtol=5e-3), \
        "mismatch vs bf16-MXU reference (gridded case)"

    print("KERNEL_OK")
</pallas_src>

<mosaic_0001>
module attributes {stable_mosaic.version = 11 : i64} {
  func.func @encoder_layer_kernel(%arg0: i32, %arg1: memref<16x32xf32, #tpu.memory_space<vmem>>, %arg2: memref<160x128xbf16, #tpu.memory_space<vmem>>, %arg3: memref<8x128xf32, #tpu.memory_space<vmem>>, %arg4: memref<16x32xf32, #tpu.memory_space<vmem>>) attributes {dimension_semantics = [#tpu.dimension_semantics<parallel>], iteration_bounds = array<i64: 1>, scalar_prefetch = 0 : i64, scratch_operands = 0 : i64, tpu.core_type = #tpu.core_type<tc>, window_params = [{transform_indices = @transform_0, window_bounds = array<i64: 16, 32>}, {pipeline_mode = #tpu.pipeline_mode<synchronous>, transform_indices = @transform_1, window_bounds = array<i64: 160, 128>}, {pipeline_mode = #tpu.pipeline_mode<synchronous>, transform_indices = @transform_2, window_bounds = array<i64: 8, 128>}, {transform_indices = @transform_3, window_bounds = array<i64: 16, 32>}]} {
    %c0 = arith.constant 0 : index
    %c0_0 = arith.constant 0 : index
    %0 = vector.load %arg1[%c0, %c0_0] : memref<16x32xf32, #tpu.memory_space<vmem>>, vector<16x32xf32>
    %c0_1 = arith.constant 0 : index
    %c0_2 = arith.constant 0 : index
    %1 = vector.load %arg2[%c0_1, %c0_2] : memref<160x128xbf16, #tpu.memory_space<vmem>>, vector<160x128xbf16>
    %c0_3 = arith.constant 0 : index
    %c0_4 = arith.constant 0 : index
    %2 = vector.load %arg3[%c0_3, %c0_4] : memref<8x128xf32, #tpu.memory_space<vmem>>, vector<8x128xf32>
    %3 = vector.extract_strided_slice %1 {offsets = [0, 0], sizes = [32, 96], strides = [1, 1]} : vector<160x128xbf16> to vector<32x96xbf16>
    %4 = vector.extract_strided_slice %1 {offsets = [32, 0], sizes = [32, 32], strides = [1, 1]} : vector<160x128xbf16> to vector<32x32xbf16>
    %5 = vector.extract_strided_slice %1 {offsets = [64, 0], sizes = [32, 64], strides = [1, 1]} : vector<160x128xbf16> to vector<32x64xbf16>
    %6 = vector.extract_strided_slice %1 {offsets = [96, 0], sizes = [64, 32], strides = [1, 1]} : vector<160x128xbf16> to vector<64x32xbf16>
    %7 = vector.extract_strided_slice %2 {offsets = [0, 0], sizes = [1, 96], strides = [1, 1]} : vector<8x128xf32> to vector<1x96xf32>
    %8 = vector.extract_strided_slice %2 {offsets = [0, 96], sizes = [1, 32], strides = [1, 1]} : vector<8x128xf32> to vector<1x32xf32>
    %9 = vector.extract_strided_slice %2 {offsets = [1, 0], sizes = [1, 64], strides = [1, 1]} : vector<8x128xf32> to vector<1x64xf32>
    %10 = vector.extract_strided_slice %2 {offsets = [1, 64], sizes = [1, 32], strides = [1, 1]} : vector<8x128xf32> to vector<1x32xf32>
    %11 = vector.extract_strided_slice %2 {offsets = [2, 0], sizes = [1, 32], strides = [1, 1]} : vector<8x128xf32> to vector<1x32xf32>
    %12 = vector.extract_strided_slice %2 {offsets = [2, 32], sizes = [1, 32], strides = [1, 1]} : vector<8x128xf32> to vector<1x32xf32>
    %13 = vector.extract_strided_slice %2 {offsets = [2, 64], sizes = [1, 32], strides = [1, 1]} : vector<8x128xf32> to vector<1x32xf32>
    %14 = vector.extract_strided_slice %2 {offsets = [2, 96], sizes = [1, 32], strides = [1, 1]} : vector<8x128xf32> to vector<1x32xf32>
    %15 = arith.truncf %0 : vector<16x32xf32> to vector<16x32xbf16>
    %cst = arith.constant dense<0.000000e+00> : vector<16x96xf32>
    %16 = tpu.matmul %15, %3, %cst {dimension_numbers = #tpu.dot_dimension_numbers<[1], [0], [0], [1], [0, 0, 1, 1], [], []>} : vector<16x32xbf16>, vector<32x96xbf16>, vector<16x96xf32> -> vector<16x96xf32>
    %17 = vector.broadcast %7 : vector<1x96xf32> to vector<16x96xf32>
    %18 = arith.addf %16, %17 : vector<16x96xf32>
    %19 = arith.truncf %18 : vector<16x96xf32> to vector<16x96xbf16>
    %20 = vector.extract_strided_slice %19 {offsets = [0, 0], sizes = [16, 32], strides = [1, 1]} : vector<16x96xbf16> to vector<16x32xbf16>
    %21 = vector.shape_cast %20 : vector<16x32xbf16> to vector<2x8x32xbf16>
    %22 = vector.extract_strided_slice %21 {offsets = [0, 0, 0], sizes = [2, 8, 8], strides = [1, 1, 1]} : vector<2x8x32xbf16> to vector<2x8x8xbf16>
    %23 = vector.extract_strided_slice %21 {offsets = [0, 0, 8], sizes = [2, 8, 8], strides = [1, 1, 1]} : vector<2x8x32xbf16> to vector<2x8x8xbf16>
    %24 = vector.extract_strided_slice %21 {offsets = [0, 0, 16], sizes = [2, 8, 8], strides = [1, 1, 1]} : vector<2x8x32xbf16> to vector<2x8x8xbf16>
    %25 = vector.extract_strided_slice %21 {offsets = [0, 0, 24], sizes = [2, 8, 8], strides = [1, 1, 1]} : vector<2x8x32xbf16> to vector<2x8x8xbf16>
    %26 = tpu.concatenate %22, %23, %24, %25 in 0 : vector<2x8x8xbf16>, vector<2x8x8xbf16>, vector<2x8x8xbf16>, vector<2x8x8xbf16> -> vector<8x8x8xbf16>
    %27 = vector.extract_strided_slice %19 {offsets = [0, 32], sizes = [16, 32], strides = [1, 1]} : vector<16x96xbf16> to vector<16x32xbf16>
    %28 = vector.shape_cast %27 : vector<16x32xbf16> to vector<2x8x32xbf16>
    %29 = vector.extract_strided_slice %28 {offsets = [0, 0, 0], sizes = [2, 8, 8], strides = [1, 1, 1]} : vector<2x8x32xbf16> to vector<2x8x8xbf16>
    %30 = vector.extract_strided_slice %28 {offsets = [0, 0, 8], sizes = [2, 8, 8], strides = [1, 1, 1]} : vector<2x8x32xbf16> to vector<2x8x8xbf16>
    %31 = vector.extract_strided_slice %28 {offsets = [0, 0, 16], sizes = [2, 8, 8], strides = [1, 1, 1]} : vector<2x8x32xbf16> to vector<2x8x8xbf16>
    %32 = vector.extract_strided_slice %28 {offsets = [0, 0, 24], sizes = [2, 8, 8], strides = [1, 1, 1]} : vector<2x8x32xbf16> to vector<2x8x8xbf16>
    %33 = tpu.concatenate %29, %30, %31, %32 in 0 : vector<2x8x8xbf16>, vector<2x8x8xbf16>, vector<2x8x8xbf16>, vector<2x8x8xbf16> -> vector<8x8x8xbf16>
    %34 = vector.extract_strided_slice %19 {offsets = [0, 64], sizes = [16, 32], strides = [1, 1]} : vector<16x96xbf16> to vector<16x32xbf16>
    %35 = vector.shape_cast %34 : vector<16x32xbf16> to vector<2x8x32xbf16>
    %36 = vector.extract_strided_slice %35 {offsets = [0, 0, 0], sizes = [2, 8, 8], strides = [1, 1, 1]} : vector<2x8x32xbf16> to vector<2x8x8xbf16>
    %37 = vector.extract_strided_slice %35 {offsets = [0, 0, 8], sizes = [2, 8, 8], strides = [1, 1, 1]} : vector<2x8x32xbf16> to vector<2x8x8xbf16>
    %38 = vector.extract_strided_slice %35 {offsets = [0, 0, 16], sizes = [2, 8, 8], strides = [1, 1, 1]} : vector<2x8x32xbf16> to vector<2x8x8xbf16>
    %39 = vector.extract_strided_slice %35 {offsets = [0, 0, 24], sizes = [2, 8, 8], strides = [1, 1, 1]} : vector<2x8x32xbf16> to vector<2x8x8xbf16>
    %40 = tpu.concatenate %36, %37, %38, %39 in 0 : vector<2x8x8xbf16>, vector<2x8x8xbf16>, vector<2x8x8xbf16>, vector<2x8x8xbf16> -> vector<8x8x8xbf16>
    "tpu.trace_start"() <{level = 10 : i32, message = "bqd,bkd->bqk"}> : () -> ()
    %cst_5 = arith.constant dense<0.000000e+00> : vector<8x8x8xf32>
    %41 = tpu.matmul %26, %33, %cst_5 {dimension_numbers = #tpu.dot_dimension_numbers<[2], [2], [1], [1], [0, 0, 0, 1, 1, 1], [0], [0]>} : vector<8x8x8xbf16>, vector<8x8x8xbf16>, vector<8x8x8xf32> -> vector<8x8x8xf32>
    "tpu.trace_stop"() : () -> ()
    %cst_6 = arith.constant 0.353553385 : f32
    %42 = vector.broadcast %cst_6 : f32 to vector<8x8x8xf32>
    %43 = arith.mulf %41, %42 : vector<8x8x8xf32>
    %cst_7 = arith.constant dense<0xFF800000> : vector<8x8xf32>
    %44 = vector.multi_reduction <maximumf>, %43, %cst_7 [2] : vector<8x8x8xf32> to vector<8x8xf32>
    %45 = vector.shape_cast %44 : vector<8x8xf32> to vector<8x8x1xf32>
    %46 = vector.broadcast %45 : vector<8x8x1xf32> to vector<8x8x8xf32>
    %47 = arith.subf %43, %46 : vector<8x8x8xf32>
    %48 = math.exp %47 : vector<8x8x8xf32>
    %cst_8 = arith.constant dense<0.000000e+00> : vector<8x8xf32>
    %49 = vector.multi_reduction <add>, %48, %cst_8 [2] : vector<8x8x8xf32> to vector<8x8xf32>
    %50 = vector.shape_cast %49 : vector<8x8xf32> to vector<8x8x1xf32>
    %51 = tpu.reciprocal %50 {approx = true} : vector<8x8x1xf32> -> vector<8x8x1xf32>
    %52 = vector.broadcast %51 : vector<8x8x1xf32> to vector<8x8x8xf32>
    %53 = arith.mulf %48, %52 : vector<8x8x8xf32>
    %54 = arith.truncf %53 : vector<8x8x8xf32> to vector<8x8x8xbf16>
    "tpu.trace_start"() <{level = 10 : i32, message = "bqk,bkd->bqd"}> : () -> ()
    %cst_9 = arith.constant dense<0.000000e+00> : vector<8x8x8xf32>
    %55 = tpu.matmul %54, %40, %cst_9 {dimension_numbers = #tpu.dot_dimension_numbers<[2], [1], [1], [2], [0, 0, 0, 1, 1, 2], [0], [0]>} : vector<8x8x8xbf16>, vector<8x8x8xbf16>, vector<8x8x8xf32> -> vector<8x8x8xf32>
    "tpu.trace_stop"() : () -> ()
    %56 = vector.shape_cast %55 : vector<8x8x8xf32> to vector<4x2x8x8xf32>
    %57 = vector.extract_strided_slice %56 {offsets = [0, 0, 0, 0], sizes = [1, 2, 8, 8], strides = [1, 1, 1, 1]} : vector<4x2x8x8xf32> to vector<1x2x8x8xf32>
    %58 = vector.shape_cast %57 : vector<1x2x8x8xf32> to vector<2x8x8xf32>
    %59 = vector.extract_strided_slice %56 {offsets = [1, 0, 0, 0], sizes = [1, 2, 8, 8], strides = [1, 1, 1, 1]} : vector<4x2x8x8xf32> to vector<1x2x8x8xf32>
    %60 = vector.shape_cast %59 : vector<1x2x8x8xf32> to vector<2x8x8xf32>
    %61 = vector.extract_strided_slice %56 {offsets = [2, 0, 0, 0], sizes = [1, 2, 8, 8], strides = [1, 1, 1, 1]} : vector<4x2x8x8xf32> to vector<1x2x8x8xf32>
    %62 = vector.shape_cast %61 : vector<1x2x8x8xf32> to vector<2x8x8xf32>
    %63 = vector.extract_strided_slice %56 {offsets = [3, 0, 0, 0], sizes = [1, 2, 8, 8], strides = [1, 1, 1, 1]} : vector<4x2x8x8xf32> to vector<1x2x8x8xf32>
    %64 = vector.shape_cast %63 : vector<1x2x8x8xf32> to vector<2x8x8xf32>
    %65 = tpu.concatenate %58, %60, %62, %64 in 2 : vector<2x8x8xf32>, vector<2x8x8xf32>, vector<2x8x8xf32>, vector<2x8x8xf32> -> vector<2x8x32xf32>
    %66 = vector.shape_cast %65 : vector<2x8x32xf32> to vector<16x32xf32>
    %67 = arith.truncf %66 : vector<16x32xf32> to vector<16x32xbf16>
    %cst_10 = arith.constant dense<0.000000e+00> : vector<16x32xf32>
    %68 = tpu.matmul %67, %4, %cst_10 {dimension_numbers = #tpu.dot_dimension_numbers<[1], [0], [0], [1], [0, 0, 1, 1], [], []>} : vector<16x32xbf16>, vector<32x32xbf16>, vector<16x32xf32> -> vector<16x32xf32>
    %69 = vector.broadcast %8 : vector<1x32xf32> to vector<16x32xf32>
    %70 = arith.addf %68, %69 : vector<16x32xf32>
    %71 = arith.addf %0, %70 : vector<16x32xf32>
    %cst_11 = arith.constant dense<0.000000e+00> : vector<16xf32>
    %72 = vector.multi_reduction <add>, %71, %cst_11 [1] : vector<16x32xf32> to vector<16xf32>
    %73 = vector.shape_cast %72 : vector<16xf32> to vector<16x1xf32>
    %cst_12 = arith.constant 3.200000e+01 : f32
    %74 = vector.broadcast %cst_12 : f32 to vector<16x1xf32>
    %75 = arith.divf %73, %74 : vector<16x1xf32>
    %76 = vector.broadcast %75 : vector<16x1xf32> to vector<16x32xf32>
    %77 = arith.subf %71, %76 : vector<16x32xf32>
    %78 = arith.mulf %77, %77 : vector<16x32xf32>
    %cst_13 = arith.constant dense<0.000000e+00> : vector<16xf32>
    %79 = vector.multi_reduction <add>, %78, %cst_13 [1] : vector<16x32xf32> to vector<16xf32>
    %80 = vector.shape_cast %79 : vector<16xf32> to vector<16x1xf32>
    %cst_14 = arith.constant 3.200000e+01 : f32
    %81 = vector.broadcast %cst_14 : f32 to vector<16x1xf32>
    %82 = arith.divf %80, %81 : vector<16x1xf32>
    %83 = vector.broadcast %75 : vector<16x1xf32> to vector<16x32xf32>
    %84 = arith.subf %71, %83 : vector<16x32xf32>
    %cst_15 = arith.constant 9.99999974E-6 : f32
    %85 = vector.broadcast %cst_15 : f32 to vector<16x1xf32>
    %86 = arith.addf %82, %85 : vector<16x1xf32>
    %87 = math.rsqrt %86 : vector<16x1xf32>
    %88 = vector.broadcast %87 : vector<16x1xf32> to vector<16x32xf32>
    %89 = arith.mulf %84, %88 : vector<16x32xf32>
    %90 = vector.broadcast %11 : vector<1x32xf32> to vector<16x32xf32>
    %91 = arith.mulf %89, %90 : vector<16x32xf32>
    %92 = vector.broadcast %12 : vector<1x32xf32> to vector<16x32xf32>
    %93 = arith.addf %91, %92 : vector<16x32xf32>
    %94 = arith.truncf %93 : vector<16x32xf32> to vector<16x32xbf16>
    %cst_16 = arith.constant dense<0.000000e+00> : vector<16x64xf32>
    %95 = tpu.matmul %94, %5, %cst_16 {dimension_numbers = #tpu.dot_dimension_numbers<[1], [0], [0], [1], [0, 0, 1, 1], [], []>} : vector<16x32xbf16>, vector<32x64xbf16>, vector<16x64xf32> -> vector<16x64xf32>
    %96 = vector.broadcast %9 : vector<1x64xf32> to vector<16x64xf32>
    %97 = arith.addf %95, %96 : vector<16x64xf32>
    %cst_17 = arith.constant 0.000000e+00 : f32
    %98 = vector.broadcast %cst_17 : f32 to vector<16x64xf32>
    %99 = arith.maximumf %97, %98 : vector<16x64xf32>
    %100 = arith.truncf %99 : vector<16x64xf32> to vector<16x64xbf16>
    %cst_18 = arith.constant dense<0.000000e+00> : vector<16x32xf32>
    %101 = tpu.matmul %100, %6, %cst_18 {dimension_numbers = #tpu.dot_dimension_numbers<[1], [0], [0], [1], [0, 0, 1, 1], [], []>} : vector<16x64xbf16>, vector<64x32xbf16>, vector<16x32xf32> -> vector<16x32xf32>
    %102 = vector.broadcast %10 : vector<1x32xf32> to vector<16x32xf32>
    %103 = arith.addf %101, %102 : vector<16x32xf32>
    %104 = arith.addf %93, %103 : vector<16x32xf32>
    %cst_19 = arith.constant dense<0.000000e+00> : vector<16xf32>
    %105 = vector.multi_reduction <add>, %104, %cst_19 [1] : vector<16x32xf32> to vector<16xf32>
    %106 = vector.shape_cast %105 : vector<16xf32> to vector<16x1xf32>
    %cst_20 = arith.constant 3.200000e+01 : f32
    %107 = vector.broadcast %cst_20 : f32 to vector<16x1xf32>
    %108 = arith.divf %106, %107 : vector<16x1xf32>
    %109 = vector.broadcast %108 : vector<16x1xf32> to vector<16x32xf32>
    %110 = arith.subf %104, %109 : vector<16x32xf32>
    %111 = arith.mulf %110, %110 : vector<16x32xf32>
    %cst_21 = arith.constant dense<0.000000e+00> : vector<16xf32>
    %112 = vector.multi_reduction <add>, %111, %cst_21 [1] : vector<16x32xf32> to vector<16xf32>
    %113 = vector.shape_cast %112 : vector<16xf32> to vector<16x1xf32>
    %cst_22 = arith.constant 3.200000e+01 : f32
    %114 = vector.broadcast %cst_22 : f32 to vector<16x1xf32>
    %115 = arith.divf %113, %114 : vector<16x1xf32>
    %116 = vector.broadcast %108 : vector<16x1xf32> to vector<16x32xf32>
    %117 = arith.subf %104, %116 : vector<16x32xf32>
    %cst_23 = arith.constant 9.99999974E-6 : f32
    %118 = vector.broadcast %cst_23 : f32 to vector<16x1xf32>
    %119 = arith.addf %115, %118 : vector<16x1xf32>
    %120 = math.rsqrt %119 : vector<16x1xf32>
    %121 = vector.broadcast %120 : vector<16x1xf32> to vector<16x32xf32>
    %122 = arith.mulf %117, %121 : vector<16x32xf32>
    %123 = vector.broadcast %13 : vector<1x32xf32> to vector<16x32xf32>
    %124 = arith.mulf %122, %123 : vector<16x32xf32>
    %125 = vector.broadcast %14 : vector<1x32xf32> to vector<16x32xf32>
    %126 = arith.addf %124, %125 : vector<16x32xf32>
    %c0_24 = arith.constant 0 : index
    %c0_25 = arith.constant 0 : index
    %127 = vector.load %arg4[%c0_24, %c0_25] : memref<16x32xf32, #tpu.memory_space<vmem>>, vector<16x32xf32>
    tpu.vector_store %arg4[%c0_24, %c0_25], %126 {strides = array<i32>} : memref<16x32xf32, #tpu.memory_space<vmem>>, vector<16x32xf32>,
    return
  }
  func.func @transform_0(%arg0: i32) -> (i32, i32) {
    %c0_i32 = arith.constant 0 : i32
    %c0_i32_0 = arith.constant 0 : i32
    return %arg0, %c0_i32 : i32, i32
  }
  func.func @transform_1(%arg0: i32) -> (i32, i32) {
    %c0_i32 = arith.constant 0 : i32
    %c0_i32_0 = arith.constant 0 : i32
    %c0_i32_1 = arith.constant 0 : i32
    return %c0_i32, %c0_i32_0 : i32, i32
  }
  func.func @transform_2(%arg0: i32) -> (i32, i32) {
    %c0_i32 = arith.constant 0 : i32
    %c0_i32_0 = arith.constant 0 : i32
    %c0_i32_1 = arith.constant 0 : i32
    return %c0_i32, %c0_i32_0 : i32, i32
  }
  func.func @transform_3(%arg0: i32) -> (i32, i32) {
    %c0_i32 = arith.constant 0 : i32
    %c0_i32_0 = arith.constant 0 : i32
    return %arg0, %c0_i32 : i32, i32
  }
}

</mosaic_0001>

<llo_original>
// kernel: encoder_layer.1
$region0: #{encoder_layer.1}
  #allocation0 [shape = 'u32[]', space=smem, size = 0x4, offset = 0x4, fixed_abs, tag = 'smem constant byte address 0x4 - core index']
  #allocation1 [shape = 'u32[144,128]{1,0:T(1,128)}', space=vmem, size = 0x12000, scoped, tag = 'internal scratch']
  %s0 = inlined_call_operand.vmem [shape: f32[16,32], index: 0, kind: input, shape index: {}]
  %s1 = inlined_call_operand.vmem [shape: bf16[160,128], index: 1, kind: input, shape index: {}]
  %s2 = inlined_call_operand.vmem [shape: f32[8,128], index: 2, kind: input, shape index: {}]
  %s3 = inlined_call_operand.hbm [shape: f32[16,32], index: 3, kind: output, shape index: {}]
  %s4 = sld [smem:[#allocation0]]
  $region22: #{encoder_layer.1} parent=0
    _
  %s6 = ssub.s32 1, %s4
  %s7 = scalar_select 0, %s6, %s4
  $region1: #{encoder_layer.1} parent=0
    #allocation2 [shape = 'u8[8192]{0}', space=vmem, size = 0x2000, scoped, tag = 'output window, operand 0, single buffered']
    #allocation3 [shape = 's32[1]{0}', space=sflag, size = 0x4, scoped, tag = 'scoped memory for encoder_layer.1']
    %8 = vsyncpa [#allocation3], 0
    // Predicated region
    $region2: #{encoder_layer.1} parent=1 // pred_check
      _
    $region3: #{encoder_layer.1} parent=1 // pred_check_branch
      %10 = sbr.rel (0) target = $region5
    $region4: #{encoder_layer.1} parent=1 // pred_region
      _
    $region5: #{encoder_layer.1} parent=1 // pred_fallthru
      _
    // Predicated region
    $region6: #{encoder_layer.1} parent=1 // pred_check
      _
    $region7: #{encoder_layer.1} parent=1 // pred_check_branch
      %12 = sbr.rel (0) target = $region9
    $region8: #{encoder_layer.1} parent=1 // pred_region
      _
    $region9: #{encoder_layer.1} parent=1 // pred_fallthru
      _
    // Predicated region
    $region10: #{encoder_layer.1} parent=1 // pred_check
      _
    $region11: #{encoder_layer.1} parent=1 // pred_check_branch
      %14 = sbr.rel (0) target = $region13
    $region12: #{encoder_layer.1} parent=1 // pred_region
      _
    $region13: #{encoder_layer.1} parent=1 // pred_fallthru
      _
    %v16 = vld [vmem:[%s0] sm:$0xff]
    %v17 = vld [vmem:[%s0 + $0x8] sm:$0xff]
    %v18 = vld [vmem:[%s1] sm:$0xf]
    %v19 = vld [vmem:[%s1 + $0x4] sm:$0xf]
    %v20 = vld [vmem:[%s1 + $0x8] sm:$0xf]
    %v21 = vld [vmem:[%s1 + $0xc] sm:$0xf]
    %v22 = vld [vmem:[%s1 + $0x10] sm:$0xf]
    %v23 = vld [vmem:[%s1 + $0x14] sm:$0xf]
    %v24 = vld [vmem:[%s1 + $0x18] sm:$0xf]
    %v25 = vld [vmem:[%s1 + $0x1c] sm:$0xf]
    %v26 = vld [vmem:[%s1 + $0x20] sm:$0xf]
    %v27 = vld [vmem:[%s1 + $0x24] sm:$0xf]
    %v28 = vld [vmem:[%s1 + $0x28] sm:$0xf]
    %v29 = vld [vmem:[%s1 + $0x2c] sm:$0xf]
    %v30 = vld [vmem:[%s1 + $0x30] sm:$0xf]
    %v31 = vld [vmem:[%s1 + $0x34] sm:$0xf]
    %v32 = vld [vmem:[%s1 + $0x38] sm:$0xf]
    %v33 = vld [vmem:[%s1 + $0x3c] sm:$0xf]
    %v34 = vld [vmem:[%s1 + $0x40] sm:$0xf]
    %v35 = vld [vmem:[%s1 + $0x44] sm:$0xf]
    %v36 = vld [vmem:[%s1 + $0x48] sm:$0xf]
    %v37 = vld [vmem:[%s1 + $0x4c] sm:$0xf]
    %v38 = vld [vmem:[%s2] sm:$0xff]
    %v39 = vpack.c.bf16 %v17, %v16
    %v40 = vlaneseq
    %v41 = vshrl.u32 %v40, 7
    %v42 = vsub.s32 0, %v41
    %v43 = vrot.slane %v38, %v42
    %v48 = vunpack.c.l.b16 %v18
    %v49 = vunpack.c.l.b16 %v19
    %v50 = vunpack.c.l.b16 %v20
    %v51 = vunpack.c.l.b16 %v21
    %v52 = vpack.c.b16 %v49, %v48
    %v53 = vpack.c.b16 %v51, %v50
    %vm56 = vcmask 261120
    %v58 = vsel %vm56, %v39, 0
    %60 = vmatprep.subr.bf16.mxu0 0
    %61 = vmatpush1.bf16.msra.mxu0 %v52
    %62 = vmatprep.subr.bf16.mxu0 0
    %63 = vmatpush1.bf16.msra.mxu0 %v53
    %64 = vmatprep.subr.bf16.mxu0 0
    %65 = vmatpush1.bf16.msra.mxu0 0
    %66 = vmatprep.subr.bf16.mxu0 0
    %67 = vmatpush1.bf16.msra.mxu0 0
    %68 = vmatprep.subr.bf16.mxu0 0
    %69 = vmatpush1.bf16.msra.mxu0 0
    %70 = vmatprep.subr.bf16.mxu0 0
    %71 = vmatpush1.bf16.msra.mxu0 0
    %72 = vmatprep.subr.bf16.mxu0 0
    %73 = vmatpush1.bf16.msra.mxu0 0
    %74 = vmatprep.subr.bf16.mxu0 0
    %75 = vmatpush1.bf16.msra.mxu0 0
    %76 = vmatprep.subr.bf16.mxu0 0
    %77 = vmatpush1.bf16.msra.mxu0 0
    %78 = vmatprep.subr.bf16.mxu0 0
    %79 = vmatpush1.bf16.msra.mxu0 0
    %80 = vmatprep.subr.bf16.mxu0 0
    %81 = vmatpush1.bf16.msra.mxu0 0
    %82 = vmatprep.subr.bf16.mxu0 0
    %83 = vmatpush1.bf16.msra.mxu0 0
    %84 = vmatprep.subr.bf16.mxu0 0
    %85 = vmatpush1.bf16.msra.mxu0 0
    %86 = vmatprep.subr.bf16.mxu0 0
    %87 = vmatpush1.bf16.msra.mxu0 0
    %88 = vmatprep.subr.bf16.mxu0 0
    %89 = vmatpush1.bf16.msra.mxu0 0
    %90 = vmatprep.subr.bf16.mxu0 0
    %91 = vmatpush1.bf16.msra.mxu0 0
    %92 = vmatprep.mubr.bf16.mxu0 0
    %93 = vmatmul.mubr.bf16.gmra.mrb[0].mxu0 %v58
    %v94 = vpop.f32.mrb[0].mxu0
    %v95 = vadd.f32 %v43, %v94
    %v96 = vpop.f32.mrb[0].mxu0
    %v97 = vpop.f32.mrb[0].mxu0
    %v98 = vadd.f32 %v43, %v97
    %v99 = vpop.f32.mrb[0].mxu0
    %100 = vdwg.mxu0
    %v101 = vpack.c.bf16 %v98, %v95
    %v103 = vunpack.c.l.b16 %v101
    %v104 = vunpack.c.h.b16 %v101
    %v105 = vpack.c.b16 %v103, %v103
    %v106 = vpack.c.b16 %v104, %v104
    %107 = vrot.lane.b32.xlu0 %v105, 120
    %v108 = vpop.permute.xlu0 %107
    %109 = vrot.lane.b32.xlu0 %v106, 120
    %v110 = vpop.permute.xlu0 %109
    %111 = vrot.lane.b32.xlu0 %v105, 112
    %v112 = vpop.permute.xlu0 %111
    %113 = vrot.lane.b32.xlu0 %v106, 112
    %v114 = vpop.permute.xlu0 %113
    %115 = vrot.lane.b32.xlu0 %v105, 104
    %v116 = vpop.permute.xlu0 %115
    %117 = vrot.lane.b32.xlu0 %v106, 104
    %v118 = vpop.permute.xlu0 %117
    %119 = vrot.lane.b32.xlu0 %v105, 96
    %v120 = vpop.permute.xlu0 %119
    %vm121 = vcmask 64512
    %v123 = vsel %vm121, %v105, 0
    %v126 = vsel %vm121, %v120, 0
    %128 = vmatprep.subr.bf16.mxu0 0
    %129 = vmatpush1.bf16.xpose.msra.mxu0 %v126
    %130 = vmatprep.subr.bf16.mxu0 0
    %131 = vmatpush1.bf16.xpose.msra.mxu0 0
    %132 = vmatprep.subr.bf16.mxu0 0
    %133 = vmatpush1.bf16.xpose.msra.mxu0 0
    %134 = vmatprep.subr.bf16.mxu0 0
    %135 = vmatpush1.bf16.xpose.msra.mxu0 0
    %136 = vmatprep.subr.bf16.mxu0 0
    %137 = vmatpush1.bf16.xpose.msra.mxu0 0
    %138 = vmatprep.subr.bf16.mxu0 0
    %139 = vmatpush1.bf16.xpose.msra.mxu0 0
    %140 = vmatprep.subr.bf16.mxu0 0
    %141 = vmatpush1.bf16.xpose.msra.mxu0 0
    %142 = vmatprep.subr.bf16.mxu0 0
    %143 = vmatpush1.bf16.xpose.msra.mxu0 0
    %144 = vmatprep.subr.bf16.mxu0 0
    %145 = vmatpush1.bf16.xpose.msra.mxu0 0
    %146 = vmatprep.subr.bf16.mxu0 0
    %147 = vmatpush1.bf16.xpose.msra.mxu0 0
    %148 = vmatprep.subr.bf16.mxu0 0
    %149 = vmatpush1.bf16.xpose.msra.mxu0 0
    %150 = vmatprep.subr.bf16.mxu0 0
    %151 = vmatpush1.bf16.xpose.msra.mxu0 0
    %152 = vmatprep.subr.bf16.mxu0 0
    %153 = vmatpush1.bf16.xpose.msra.mxu0 0
    %154 = vmatprep.subr.bf16.mxu0 0
    %155 = vmatpush1.bf16.xpose.msra.mxu0 0
    %156 = vmatprep.subr.bf16.mxu0 0
    %157 = vmatpush1.bf16.xpose.msra.mxu0 0
    %158 = vmatprep.subr.bf16.mxu0 0
    %159 = vmatpush1.bf16.xpose.msra.mxu0 0
    %160 = vmatprep.mubr.bf16.mxu0 0
    %161 = vmatmul.mubr.bf16.gmra.mrb[0].mxu0 %v123
    %v162 = vpop.f32.mrb[0].mxu0
    %v163 = vadd.f32 0.0, %v162
    %v164 = vpop.f32.mrb[0].mxu0
    %v165 = vpop.f32.mrb[0].mxu0
    %v166 = vpop.f32.mrb[0].mxu0
    %167 = vdwg.mxu0
    %168 = vrot.lane.b32.xlu0 %v106, 96
    %v169 = vpop.permute.xlu0 %168
    %v171 = vsel %vm121, %v106, 0
    %v174 = vsel %vm121, %v169, 0
    %176 = vmatprep.subr.bf16.mxu0 0
    %177 = vmatpush1.bf16.xpose.msra.mxu0 %v174
    %178 = vmatprep.subr.bf16.mxu0 0
    %179 = vmatpush1.bf16.xpose.msra.mxu0 0
    %180 = vmatprep.subr.bf16.mxu0 0
    %181 = vmatpush1.bf16.xpose.msra.mxu0 0
    %182 = vmatprep.subr.bf16.mxu0 0
    %183 = vmatpush1.bf16.xpose.msra.mxu0 0
    %184 = vmatprep.subr.bf16.mxu0 0
    %185 = vmatpush1.bf16.xpose.msra.mxu0 0
    %186 = vmatprep.subr.bf16.mxu0 0
    %187 = vmatpush1.bf16.xpose.msra.mxu0 0
    %188 = vmatprep.subr.bf16.mxu0 0
    %189 = vmatpush1.bf16.xpose.msra.mxu0 0
    %190 = vmatprep.subr.bf16.mxu0 0
    %191 = vmatpush1.bf16.xpose.msra.mxu0 0
    %192 = vmatprep.subr.bf16.mxu0 0
    %193 = vmatpush1.bf16.xpose.msra.mxu0 0
    %194 = vmatprep.subr.bf16.mxu0 0
    %195 = vmatpush1.bf16.xpose.msra.mxu0 0
    %196 = vmatprep.subr.bf16.mxu0 0
    %197 = vmatpush1.bf16.xpose.msra.mxu0 0
    %198 = vmatprep.subr.bf16.mxu0 0
    %199 = vmatpush1.bf16.xpose.msra.mxu0 0
    %200 = vmatprep.subr.bf16.mxu0 0
    %201 = vmatpush1.bf16.xpose.msra.mxu0 0
    %202 = vmatprep.subr.bf16.mxu0 0
    %203 = vmatpush1.bf16.xpose.msra.mxu0 0
    %204 = vmatprep.subr.bf16.mxu0 0
    %205 = vmatpush1.bf16.xpose.msra.mxu0 0
    %206 = vmatprep.subr.bf16.mxu0 0
    %207 = vmatpush1.bf16.xpose.msra.mxu0 0
    %208 = vmatprep.mubr.bf16.mxu0 0
    %209 = vmatmul.mubr.bf16.gmra.mrb[0].mxu0 %v171
    %v210 = vpop.f32.mrb[0].mxu0
    %v211 = vadd.f32 0.0, %v210
    %v212 = vpop.f32.mrb[0].mxu0
    %v213 = vpop.f32.mrb[0].mxu0
    %v214 = vpop.f32.mrb[0].mxu0
    %215 = vdwg.mxu0
    %v216 = vunpack.c.l.b16 %v108
    %v217 = vpack.c.b16 %v216, %v216
    %218 = vrot.lane.b32.xlu0 %v217, 96
    %v219 = vpop.permute.xlu0 %218
    %v221 = vsel %vm121, %v108, 0
    %v224 = vsel %vm121, %v219, 0
    %226 = vmatprep.subr.bf16.mxu0 0
    %227 = vmatpush1.bf16.xpose.msra.mxu0 %v224
    %228 = vmatprep.subr.bf16.mxu0 0
    %229 = vmatpush1.bf16.xpose.msra.mxu0 0
    %230 = vmatprep.subr.bf16.mxu0 0
    %231 = vmatpush1.bf16.xpose.msra.mxu0 0
    %232 = vmatprep.subr.bf16.mxu0 0
    %233 = vmatpush1.bf16.xpose.msra.mxu0 0
    %234 = vmatprep.subr.bf16.mxu0 0
    %235 = vmatpush1.bf16.xpose.msra.mxu0 0
    %236 = vmatprep.subr.bf16.mxu0 0
    %237 = vmatpush1.bf16.xpose.msra.mxu0 0
    %238 = vmatprep.subr.bf16.mxu0 0
    %239 = vmatpush1.bf16.xpose.msra.mxu0 0
    %240 = vmatprep.subr.bf16.mxu0 0
    %241 = vmatpush1.bf16.xpose.msra.mxu0 0
    %242 = vmatprep.subr.bf16.mxu0 0
    %243 = vmatpush1.bf16.xpose.msra.mxu0 0
    %244 = vmatprep.subr.bf16.mxu0 0
    %245 = vmatpush1.bf16.xpose.msra.mxu0 0
    %246 = vmatprep.subr.bf16.mxu0 0
    %247 = vmatpush1.bf16.xpose.msra.mxu0 0
    %248 = vmatprep.subr.bf16.mxu0 0
    %249 = vmatpush1.bf16.xpose.msra.mxu0 0
    %250 = vmatprep.subr.bf16.mxu0 0
    %251 = vmatpush1.bf16.xpose.msra.mxu0 0
    %252 = vmatprep.subr.bf16.mxu0 0
    %253 = vmatpush1.bf16.xpose.msra.mxu0 0
    %254 = vmatprep.subr.bf16.mxu0 0
    %255 = vmatpush1.bf16.xpose.msra.mxu0 0
    %256 = vmatprep.subr.bf16.mxu0 0
    %257 = vmatpush1.bf16.xpose.msra.mxu0 0
    %258 = vmatprep.mubr.bf16.mxu0 0
    %259 = vmatmul.mubr.bf16.gmra.mrb[0].mxu0 %v221
    %v260 = vpop.f32.mrb[0].mxu0
    %v261 = vadd.f32 0.0, %v260
    %v262 = vpop.f32.mrb[0].mxu0
    %v263 = vpop.f32.mrb[0].mxu0
    %v264 = vpop.f32.mrb[0].mxu0
    %265 = vdwg.mxu0
    %v266 = vunpack.c.l.b16 %v110
    %v267 = vpack.c.b16 %v266, %v266
    %268 = vrot.lane.b32.xlu0 %v267, 96
    %v269 = vpop.permute.xlu0 %268
    %v271 = vsel %vm121, %v110, 0
    %v274 = vsel %vm121, %v269, 0
    %276 = vmatprep.subr.bf16.mxu0 0
    %277 = vmatpush1.bf16.xpose.msra.mxu0 %v274
    %278 = vmatprep.subr.bf16.mxu0 0
    %279 = vmatpush1.bf16.xpose.msra.mxu0 0
    %280 = vmatprep.subr.bf16.mxu0 0
    %281 = vmatpush1.bf16.xpose.msra.mxu0 0
    %282 = vmatprep.subr.bf16.mxu0 0
    %283 = vmatpush1.bf16.xpose.msra.mxu0 0
    %284 = vmatprep.subr.bf16.mxu0 0
    %285 = vmatpush1.bf16.xpose.msra.mxu0 0
    %286 = vmatprep.subr.bf16.mxu0 0
    %287 = vmatpush1.bf16.xpose.msra.mxu0 0
    %288 = vmatprep.subr.bf16.mxu0 0
    %289 = vmatpush1.bf16.xpose.msra.mxu0 0
    %290 = vmatprep.subr.bf16.mxu0 0
    %291 = vmatpush1.bf16.xpose.msra.mxu0 0
    %292 = vmatprep.subr.bf16.mxu0 0
    %293 = vmatpush1.bf16.xpose.msra.mxu0 0
    %294 = vmatprep.subr.bf16.mxu0 0
    %295 = vmatpush1.bf16.xpose.msra.mxu0 0
    %296 = vmatprep.subr.bf16.mxu0 0
    %297 = vmatpush1.bf16.xpose.msra.mxu0 0
    %298 = vmatprep.subr.bf16.mxu0 0
    %299 = vmatpush1.bf16.xpose.msra.mxu0 0
    %300 = vmatprep.subr.bf16.mxu0 0
    %301 = vmatpush1.bf16.xpose.msra.mxu0 0
    %302 = vmatprep.subr.bf16.mxu0 0
    %303 = vmatpush1.bf16.xpose.msra.mxu0 0
    %304 = vmatprep.subr.bf16.mxu0 0
    %305 = vmatpush1.bf16.xpose.msra.mxu0 0
    %306 = vmatprep.subr.bf16.mxu0 0
    %307 = vmatpush1.bf16.xpose.msra.mxu0 0
    %308 = vmatprep.mubr.bf16.mxu0 0
    %309 = vmatmul.mubr.bf16.gmra.mrb[0].mxu0 %v271
    %v310 = vpop.f32.mrb[0].mxu0
    %v311 = vadd.f32 0.0, %v310
    %v312 = vpop.f32.mrb[0].mxu0
    %v313 = vpop.f32.mrb[0].mxu0
    %v314 = vpop.f32.mrb[0].mxu0
    %315 = vdwg.mxu0
    %v316 = vunpack.c.l.b16 %v112
    %v317 = vpack.c.b16 %v316, %v316
    %318 = vrot.lane.b32.xlu0 %v317, 96
    %v319 = vpop.permute.xlu0 %318
    %v321 = vsel %vm121, %v112, 0
    %v324 = vsel %vm121, %v319, 0
    %326 = vmatprep.subr.bf16.mxu0 0
    %327 = vmatpush1.bf16.xpose.msra.mxu0 %v324
    %328 = vmatprep.subr.bf16.mxu0 0
    %329 = vmatpush1.bf16.xpose.msra.mxu0 0
    %330 = vmatprep.subr.bf16.mxu0 0
    %331 = vmatpush1.bf16.xpose.msra.mxu0 0
    %332 = vmatprep.subr.bf16.mxu0 0
    %333 = vmatpush1.bf16.xpose.msra.mxu0 0
    %334 = vmatprep.subr.bf16.mxu0 0
    %335 = vmatpush1.bf16.xpose.msra.mxu0 0
    %336 = vmatprep.subr.bf16.mxu0 0
    %337 = vmatpush1.bf16.xpose.msra.mxu0 0
    %338 = vmatprep.subr.bf16.mxu0 0
    %339 = vmatpush1.bf16.xpose.msra.mxu0 0
    %340 = vmatprep.subr.bf16.mxu0 0
    %341 = vmatpush1.bf16.xpose.msra.mxu0 0
    %342 = vmatprep.subr.bf16.mxu0 0
    %343 = vmatpush1.bf16.xpose.msra.mxu0 0
    %344 = vmatprep.subr.bf16.mxu0 0
    %345 = vmatpush1.bf16.xpose.msra.mxu0 0
    %346 = vmatprep.subr.bf16.mxu0 0
    %347 = vmatpush1.bf16.xpose.msra.mxu0 0
    %348 = vmatprep.subr.bf16.mxu0 0
    %349 = vmatpush1.bf16.xpose.msra.mxu0 0
    %350 = vmatprep.subr.bf16.mxu0 0
    %351 = vmatpush1.bf16.xpose.msra.mxu0 0
    %352 = vmatprep.subr.bf16.mxu0 0
    %353 = vmatpush1.bf16.xpose.msra.mxu0 0
    %354 = vmatprep.subr.bf16.mxu0 0
    %355 = vmatpush1.bf16.xpose.msra.mxu0 0
    %356 = vmatprep.subr.bf16.mxu0 0
    %357 = vmatpush1.bf16.xpose.msra.mxu0 0
    %358 = vmatprep.mubr.bf16.mxu0 0
    %359 = vmatmul.mubr.bf16.gmra.mrb[0].mxu0 %v321
    %v360 = vpop.f32.mrb[0].mxu0
    %v361 = vadd.f32 0.0, %v360
    %v362 = vpop.f32.mrb[0].mxu0
    %v363 = vpop.f32.mrb[0].mxu0
    %v364 = vpop.f32.mrb[0].mxu0
    %365 = vdwg.mxu0
    %v366 = vunpack.c.l.b16 %v114
    %v367 = vpack.c.b16 %v366, %v366
    %368 = vrot.lane.b32.xlu0 %v367, 96
    %v369 = vpop.permute.xlu0 %368
    %v371 = vsel %vm121, %v114, 0
    %v374 = vsel %vm121, %v369, 0
    %376 = vmatprep.subr.bf16.mxu0 0
    %377 = vmatpush1.bf16.xpose.msra.mxu0 %v374
    %378 = vmatprep.subr.bf16.mxu0 0
    %379 = vmatpush1.bf16.xpose.msra.mxu0 0
    %380 = vmatprep.subr.bf16.mxu0 0
    %381 = vmatpush1.bf16.xpose.msra.mxu0 0
    %382 = vmatprep.subr.bf16.mxu0 0
    %383 = vmatpush1.bf16.xpose.msra.mxu0 0
    %384 = vmatprep.subr.bf16.mxu0 0
    %385 = vmatpush1.bf16.xpose.msra.mxu0 0
    %386 = vmatprep.subr.bf16.mxu0 0
    %387 = vmatpush1.bf16.xpose.msra.mxu0 0
    %388 = vmatprep.subr.bf16.mxu0 0
    %389 = vmatpush1.bf16.xpose.msra.mxu0 0
    %390 = vmatprep.subr.bf16.mxu0 0
    %391 = vmatpush1.bf16.xpose.msra.mxu0 0
    %392 = vmatprep.subr.bf16.mxu0 0
    %393 = vmatpush1.bf16.xpose.msra.mxu0 0
    %394 = vmatprep.subr.bf16.mxu0 0
    %395 = vmatpush1.bf16.xpose.msra.mxu0 0
    %396 = vmatprep.subr.bf16.mxu0 0
    %397 = vmatpush1.bf16.xpose.msra.mxu0 0
    %398 = vmatprep.subr.bf16.mxu0 0
    %399 = vmatpush1.bf16.xpose.msra.mxu0 0
    %400 = vmatprep.subr.bf16.mxu0 0
    %401 = vmatpush1.bf16.xpose.msra.mxu0 0
    %402 = vmatprep.subr.bf16.mxu0 0
    %403 = vmatpush1.bf16.xpose.msra.mxu0 0
    %404 = vmatprep.subr.bf16.mxu0 0
    %405 = vmatpush1.bf16.xpose.msra.mxu0 0
    %406 = vmatprep.subr.bf16.mxu0 0
    %407 = vmatpush1.bf16.xpose.msra.mxu0 0
    %408 = vmatprep.mubr.bf16.mxu0 0
    %409 = vmatmul.mubr.bf16.gmra.mrb[0].mxu0 %v371
    %v410 = vpop.f32.mrb[0].mxu0
    %v411 = vadd.f32 0.0, %v410
    %v412 = vpop.f32.mrb[0].mxu0
    %v413 = vpop.f32.mrb[0].mxu0
    %v414 = vpop.f32.mrb[0].mxu0
    %415 = vdwg.mxu0
    %v416 = vunpack.c.l.b16 %v116
    %v417 = vpack.c.b16 %v416, %v416
    %418 = vrot.lane.b32.xlu0 %v417, 96
    %v419 = vpop.permute.xlu0 %418
    %v421 = vsel %vm121, %v116, 0
    %v424 = vsel %vm121, %v419, 0
    %426 = vmatprep.subr.bf16.mxu0 0
    %427 = vmatpush1.bf16.xpose.msra.mxu0 %v424
    %428 = vmatprep.subr.bf16.mxu0 0
    %429 = vmatpush1.bf16.xpose.msra.mxu0 0
    %430 = vmatprep.subr.bf16.mxu0 0
    %431 = vmatpush1.bf16.xpose.msra.mxu0 0
    %432 = vmatprep.subr.bf16.mxu0 0
    %433 = vmatpush1.bf16.xpose.msra.mxu0 0
    %434 = vmatprep.subr.bf16.mxu0 0
    %435 = vmatpush1.bf16.xpose.msra.mxu0 0
    %436 = vmatprep.subr.bf16.mxu0 0
    %437 = vmatpush1.bf16.xpose.msra.mxu0 0
    %438 = vmatprep.subr.bf16.mxu0 0
    %439 = vmatpush1.bf16.xpose.msra.mxu0 0
    %440 = vmatprep.subr.bf16.mxu0 0
    %441 = vmatpush1.bf16.xpose.msra.mxu0 0
    %442 = vmatprep.subr.bf16.mxu0 0
    %443 = vmatpush1.bf16.xpose.msra.mxu0 0
    %444 = vmatprep.subr.bf16.mxu0 0
    %445 = vmatpush1.bf16.xpose.msra.mxu0 0
    %446 = vmatprep.subr.bf16.mxu0 0
    %447 = vmatpush1.bf16.xpose.msra.mxu0 0
    %448 = vmatprep.subr.bf16.mxu0 0
    %449 = vmatpush1.bf16.xpose.msra.mxu0 0
    %450 = vmatprep.subr.bf16.mxu0 0
    %451 = vmatpush1.bf16.xpose.msra.mxu0 0
    %452 = vmatprep.subr.bf16.mxu0 0
    %453 = vmatpush1.bf16.xpose.msra.mxu0 0
    %454 = vmatprep.subr.bf16.mxu0 0
    %455 = vmatpush1.bf16.xpose.msra.mxu0 0
    %456 = vmatprep.subr.bf16.mxu0 0
    %457 = vmatpush1.bf16.xpose.msra.mxu0 0
    %458 = vmatprep.mubr.bf16.mxu0 0
    %459 = vmatmul.mubr.bf16.gmra.mrb[0].mxu0 %v421
    %v460 = vpop.f32.mrb[0].mxu0
    %v461 = vadd.f32 0.0, %v460
    %v462 = vpop.f32.mrb[0].mxu0
    %v463 = vpop.f32.mrb[0].mxu0
    %v464 = vpop.f32.mrb[0].mxu0
    %465 = vdwg.mxu0
    %v466 = vunpack.c.l.b16 %v118
    %v467 = vpack.c.b16 %v466, %v466
    %468 = vrot.lane.b32.xlu0 %v467, 96
    %v469 = vpop.permute.xlu0 %468
    %v471 = vsel %vm121, %v118, 0
    %v474 = vsel %vm121, %v469, 0
    %476 = vmatprep.subr.bf16.mxu0 0
    %477 = vmatpush1.bf16.xpose.msra.mxu0 %v474
    %478 = vmatprep.subr.bf16.mxu0 0
    %479 = vmatpush1.bf16.xpose.msra.mxu0 0
    %480 = vmatprep.subr.bf16.mxu0 0
    %481 = vmatpush1.bf16.xpose.msra.mxu0 0
    %482 = vmatprep.subr.bf16.mxu0 0
    %483 = vmatpush1.bf16.xpose.msra.mxu0 0
    %484 = vmatprep.subr.bf16.mxu0 0
    %485 = vmatpush1.bf16.xpose.msra.mxu0 0
    %486 = vmatprep.subr.bf16.mxu0 0
    %487 = vmatpush1.bf16.xpose.msra.mxu0 0
    %488 = vmatprep.subr.bf16.mxu0 0
    %489 = vmatpush1.bf16.xpose.msra.mxu0 0
    %490 = vmatprep.subr.bf16.mxu0 0
    %491 = vmatpush1.bf16.xpose.msra.mxu0 0
    %492 = vmatprep.subr.bf16.mxu0 0
    %493 = vmatpush1.bf16.xpose.msra.mxu0 0
    %494 = vmatprep.subr.bf16.mxu0 0
    %495 = vmatpush1.bf16.xpose.msra.mxu0 0
    %496 = vmatprep.subr.bf16.mxu0 0
    %497 = vmatpush1.bf16.xpose.msra.mxu0 0
    %498 = vmatprep.subr.bf16.mxu0 0
    %499 = vmatpush1.bf16.xpose.msra.mxu0 0
    %500 = vmatprep.subr.bf16.mxu0 0
    %501 = vmatpush1.bf16.xpose.msra.mxu0 0
    %502 = vmatprep.subr.bf16.mxu0 0
    %503 = vmatpush1.bf16.xpose.msra.mxu0 0
    %504 = vmatprep.subr.bf16.mxu0 0
    %505 = vmatpush1.bf16.xpose.msra.mxu0 0
    %506 = vmatprep.subr.bf16.mxu0 0
    %507 = vmatpush1.bf16.xpose.msra.mxu0 0
    %508 = vmatprep.mubr.bf16.mxu0 0
    %509 = vmatmul.mubr.bf16.gmra.mrb[0].mxu0 %v471
    %v510 = vpop.f32.mrb[0].mxu0
    %v511 = vadd.f32 0.0, %v510
    %v512 = vpop.f32.mrb[0].mxu0
    %v513 = vpop.f32.mrb[0].mxu0
    %v514 = vpop.f32.mrb[0].mxu0
    %515 = vdwg.mxu0
    %v516 = vmul.f32 %v163, 0.35355338
    %v517 = vmul.f32 %v211, 0.35355338
    %v518 = vmul.f32 %v261, 0.35355338
    %v519 = vmul.f32 %v311, 0.35355338
    %v520 = vmul.f32 %v361, 0.35355338
    %v521 = vmul.f32 %v411, 0.35355338
    %v522 = vmul.f32 %v461, 0.35355338
    %v523 = vmul.f32 %v511, 0.35355338
    %v524 = vsel %vm121, %v516, -inf
    %525 = vmax.xlane.f32.xlu0 %v524
    %v526 = vpop.xlane.xlu0 %525
    %v527 = vsel %vm121, %v517, -inf
    %528 = vmax.xlane.f32.xlu0 %v527
    %v529 = vpop.xlane.xlu0 %528
    %v530 = vsel %vm121, %v518, -inf
    %531 = vmax.xlane.f32.xlu0 %v530
    %v532 = vpop.xlane.xlu0 %531
    %v533 = vsel %vm121, %v519, -inf
    %534 = vmax.xlane.f32.xlu0 %v533
    %v535 = vpop.xlane.xlu0 %534
    %v536 = vsel %vm121, %v520, -inf
    %537 = vmax.xlane.f32.xlu0 %v536
    %v538 = vpop.xlane.xlu0 %537
    %v539 = vsel %vm121, %v521, -inf
    %540 = vmax.xlane.f32.xlu0 %v539
    %v541 = vpop.xlane.xlu0 %540
    %v542 = vsel %vm121, %v522, -inf
    %543 = vmax.xlane.f32.xlu0 %v542
    %v544 = vpop.xlane.xlu0 %543
    %v545 = vsel %vm121, %v523, -inf
    %546 = vmax.xlane.f32.xlu0 %v545
    %v547 = vpop.xlane.xlu0 %546
    %v548 = vsub.f32 %v516, %v526
    %v549 = vsub.f32 %v517, %v529
    %v550 = vsub.f32 %v518, %v532
    %v551 = vsub.f32 %v519, %v535
    %v552 = vsub.f32 %v520, %v538
    %v553 = vsub.f32 %v521, %v541
    %v554 = vsub.f32 %v522, %v544
    %v555 = vsub.f32 %v523, %v547
    %v556 = vmul.f32 %v548, 1.442695
    %v557 = vpow.pop %v556
    %v558 = vmul.f32 %v549, 1.442695
    %v559 = vpow.pop %v558
    %v560 = vmul.f32 %v550, 1.442695
    %v561 = vpow.pop %v560
    %v562 = vmul.f32 %v551, 1.442695
    %v563 = vpow.pop %v562
    %v564 = vmul.f32 %v552, 1.442695
    %v565 = vpow.pop %v564
    %v566 = vmul.f32 %v553, 1.442695
    %v567 = vpow.pop %v566
    %v568 = vmul.f32 %v554, 1.442695
    %v569 = vpow.pop %v568
    %v570 = vmul.f32 %v555, 1.442695
    %v571 = vpow.pop %v570
    %v572 = vsel %vm121, %v557, 0.0
    %573 = vadd.xlane.f32.xlu0 %v572
    %v574 = vpop.xlane.xlu0 %573
    %v575 = vsel %vm121, %v559, 0.0
    %576 = vadd.xlane.f32.xlu0 %v575
    %v577 = vpop.xlane.xlu0 %576
    %v578 = vsel %vm121, %v561, 0.0
    %579 = vadd.xlane.f32.xlu0 %v578
    %v580 = vpop.xlane.xlu0 %579
    %v581 = vsel %vm121, %v563, 0.0
    %582 = vadd.xlane.f32.xlu0 %v581
    %v583 = vpop.xlane.xlu0 %582
    %v584 = vsel %vm121, %v565, 0.0
    %585 = vadd.xlane.f32.xlu0 %v584
    %v586 = vpop.xlane.xlu0 %585
    %v587 = vsel %vm121, %v567, 0.0
    %588 = vadd.xlane.f32.xlu0 %v587
    %v589 = vpop.xlane.xlu0 %588
    %v590 = vsel %vm121, %v569, 0.0
    %591 = vadd.xlane.f32.xlu0 %v590
    %v592 = vpop.xlane.xlu0 %591
    %v593 = vsel %vm121, %v571, 0.0
    %594 = vadd.xlane.f32.xlu0 %v593
    %v595 = vpop.xlane.xlu0 %594
    %v596 = vrcp.pop %v574
    %v597 = vrcp.pop %v577
    %v598 = vrcp.pop %v580
    %v599 = vrcp.pop %v583
    %v600 = vrcp.pop %v586
    %v601 = vrcp.pop %v589
    %v602 = vrcp.pop %v592
    %v603 = vrcp.pop %v595
    %v604 = vmul.f32 %v557, %v596
    %v605 = vmul.f32 %v559, %v597
    %v606 = vmul.f32 %v561, %v598
    %v607 = vmul.f32 %v563, %v599
    %v608 = vmul.f32 %v565, %v600
    %v609 = vmul.f32 %v567, %v601
    %v610 = vmul.f32 %v569, %v602
    %v611 = vmul.f32 %v571, %v603
    %v612 = vpack.c.bf16 %v604, %v604
    %v613 = vpack.c.bf16 %v605, %v605
    %v614 = vpack.c.bf16 %v606, %v606
    %v615 = vpack.c.bf16 %v607, %v607
    %v616 = vpack.c.bf16 %v608, %v608
    %v617 = vpack.c.bf16 %v609, %v609
    %v618 = vpack.c.bf16 %v610, %v610
    %v619 = vpack.c.bf16 %v611, %v611
    %620 = vrot.lane.b32.xlu0 %v105, 64
    %v621 = vpop.permute.xlu0 %620
    %v623 = vsel %vm121, %v612, 0
    %vm625 = vcmask 1043456
    %v627 = vsel %vm625, %v621, 0
    %629 = vmatprep.subr.bf16.mxu0 0
    %630 = vmatpush1.bf16.msra.mxu0 %v627
    %631 = vmatprep.subr.bf16.mxu0 0
    %632 = vmatpush1.bf16.msra.mxu0 0
    %633 = vmatprep.subr.bf16.mxu0 0
    %634 = vmatpush1.bf16.msra.mxu0 0
    %635 = vmatprep.subr.bf16.mxu0 0
    %636 = vmatpush1.bf16.msra.mxu0 0
    %637 = vmatprep.subr.bf16.mxu0 0
    %638 = vmatpush1.bf16.msra.mxu0 0
    %639 = vmatprep.subr.bf16.mxu0 0
    %640 = vmatpush1.bf16.msra.mxu0 0
    %641 = vmatprep.subr.bf16.mxu0 0
    %642 = vmatpush1.bf16.msra.mxu0 0
    %643 = vmatprep.subr.bf16.mxu0 0
    %644 = vmatpush1.bf16.msra.mxu0 0
    %645 = vmatprep.subr.bf16.mxu0 0
    %646 = vmatpush1.bf16.msra.mxu0 0
    %647 = vmatprep.subr.bf16.mxu0 0
    %648 = vmatpush1.bf16.msra.mxu0 0
    %649 = vmatprep.subr.bf16.mxu0 0
    %650 = vmatpush1.bf16.msra.mxu0 0
    %651 = vmatprep.subr.bf16.mxu0 0
    %652 = vmatpush1.bf16.msra.mxu0 0
    %653 = vmatprep.subr.bf16.mxu0 0
    %654 = vmatpush1.bf16.msra.mxu0 0
    %655 = vmatprep.subr.bf16.mxu0 0
    %656 = vmatpush1.bf16.msra.mxu0 0
    %657 = vmatprep.subr.bf16.mxu0 0
    %658 = vmatpush1.bf16.msra.mxu0 0
    %659 = vmatprep.subr.bf16.mxu0 0
    %660 = vmatpush1.bf16.msra.mxu0 0
    %661 = vmatprep.mubr.bf16.mxu0 0
    %662 = vmatmul.mubr.bf16.gmra.mrb[0].mxu0 %v623
    %v663 = vpop.f32.mrb[0].mxu0
    %v664 = vadd.f32 0.0, %v663
    %v665 = vpop.f32.mrb[0].mxu0
    %v666 = vpop.f32.mrb[0].mxu0
    %v667 = vpop.f32.mrb[0].mxu0
    %668 = vdwg.mxu0
    %669 = vrot.lane.b32.xlu0 %v106, 64
    %v670 = vpop.permute.xlu0 %669
    %v672 = vsel %vm121, %v613, 0
    %v675 = vsel %vm625, %v670, 0
    %677 = vmatprep.subr.bf16.mxu0 0
    %678 = vmatpush1.bf16.msra.mxu0 %v675
    %679 = vmatprep.subr.bf16.mxu0 0
    %680 = vmatpush1.bf16.msra.mxu0 0
    %681 = vmatprep.subr.bf16.mxu0 0
    %682 = vmatpush1.bf16.msra.mxu0 0
    %683 = vmatprep.subr.bf16.mxu0 0
    %684 = vmatpush1.bf16.msra.mxu0 0
    %685 = vmatprep.subr.bf16.mxu0 0
    %686 = vmatpush1.bf16.msra.mxu0 0
    %687 = vmatprep.subr.bf16.mxu0 0
    %688 = vmatpush1.bf16.msra.mxu0 0
    %689 = vmatprep.subr.bf16.mxu0 0
    %690 = vmatpush1.bf16.msra.mxu0 0
    %691 = vmatprep.subr.bf16.mxu0 0
    %692 = vmatpush1.bf16.msra.mxu0 0
    %693 = vmatprep.subr.bf16.mxu0 0
    %694 = vmatpush1.bf16.msra.mxu0 0
    %695 = vmatprep.subr.bf16.mxu0 0
    %696 = vmatpush1.bf16.msra.mxu0 0
    %697 = vmatprep.subr.bf16.mxu0 0
    %698 = vmatpush1.bf16.msra.mxu0 0
    %699 = vmatprep.subr.bf16.mxu0 0
    %700 = vmatpush1.bf16.msra.mxu0 0
    %701 = vmatprep.subr.bf16.mxu0 0
    %702 = vmatpush1.bf16.msra.mxu0 0
    %703 = vmatprep.subr.bf16.mxu0 0
    %704 = vmatpush1.bf16.msra.mxu0 0
    %705 = vmatprep.subr.bf16.mxu0 0
    %706 = vmatpush1.bf16.msra.mxu0 0
    %707 = vmatprep.subr.bf16.mxu0 0
    %708 = vmatpush1.bf16.msra.mxu0 0
    %709 = vmatprep.mubr.bf16.mxu0 0
    %710 = vmatmul.mubr.bf16.gmra.mrb[0].mxu0 %v672
    %v711 = vpop.f32.mrb[0].mxu0
    %v712 = vadd.f32 0.0, %v711
    %v713 = vpop.f32.mrb[0].mxu0
    %v714 = vpop.f32.mrb[0].mxu0
    %v715 = vpop.f32.mrb[0].mxu0
    %716 = vdwg.mxu0
    %717 = vrot.lane.b32.xlu0 %v217, 64
    %v718 = vpop.permute.xlu0 %717
    %v720 = vsel %vm121, %v614, 0
    %v723 = vsel %vm625, %v718, 0
    %725 = vmatprep.subr.bf16.mxu0 0
    %726 = vmatpush1.bf16.msra.mxu0 %v723
    %727 = vmatprep.subr.bf16.mxu0 0
    %728 = vmatpush1.bf16.msra.mxu0 0
    %729 = vmatprep.subr.bf16.mxu0 0
    %730 = vmatpush1.bf16.msra.mxu0 0
    %731 = vmatprep.subr.bf16.mxu0 0
    %732 = vmatpush1.bf16.msra.mxu0 0
    %733 = vmatprep.subr.bf16.mxu0 0
    %734 = vmatpush1.bf16.msra.mxu0 0
    %735 = vmatprep.subr.bf16.mxu0 0
    %736 = vmatpush1.bf16.msra.mxu0 0
    %737 = vmatprep.subr.bf16.mxu0 0
    %738 = vmatpush1.bf16.msra.mxu0 0
    %739 = vmatprep.subr.bf16.mxu0 0
    %740 = vmatpush1.bf16.msra.mxu0 0
    %741 = vmatprep.subr.bf16.mxu0 0
    %742 = vmatpush1.bf16.msra.mxu0 0
    %743 = vmatprep.subr.bf16.mxu0 0
    %744 = vmatpush1.bf16.msra.mxu0 0
    %745 = vmatprep.subr.bf16.mxu0 0
    %746 = vmatpush1.bf16.msra.mxu0 0
    %747 = vmatprep.subr.bf16.mxu0 0
    %748 = vmatpush1.bf16.msra.mxu0 0
    %749 = vmatprep.subr.bf16.mxu0 0
    %750 = vmatpush1.bf16.msra.mxu0 0
    %751 = vmatprep.subr.bf16.mxu0 0
    %752 = vmatpush1.bf16.msra.mxu0 0
    %753 = vmatprep.subr.bf16.mxu0 0
    %754 = vmatpush1.bf16.msra.mxu0 0
    %755 = vmatprep.subr.bf16.mxu0 0
    %756 = vmatpush1.bf16.msra.mxu0 0
    %757 = vmatprep.mubr.bf16.mxu0 0
    %758 = vmatmul.mubr.bf16.gmra.mrb[0].mxu0 %v720
    %v759 = vpop.f32.mrb[0].mxu0
    %v760 = vadd.f32 0.0, %v759
    %v761 = vpop.f32.mrb[0].mxu0
    %v762 = vpop.f32.mrb[0].mxu0
    %v763 = vpop.f32.mrb[0].mxu0
    %764 = vdwg.mxu0
    %765 = vrot.lane.b32.xlu0 %v267, 64
    %v766 = vpop.permute.xlu0 %765
    %v768 = vsel %vm121, %v615, 0
    %v771 = vsel %vm625, %v766, 0
    %773 = vmatprep.subr.bf16.mxu0 0
    %774 = vmatpush1.bf16.msra.mxu0 %v771
    %775 = vmatprep.subr.bf16.mxu0 0
    %776 = vmatpush1.bf16.msra.mxu0 0
    %777 = vmatprep.subr.bf16.mxu0 0
    %778 = vmatpush1.bf16.msra.mxu0 0
    %779 = vmatprep.subr.bf16.mxu0 0
    %780 = vmatpush1.bf16.msra.mxu0 0
    %781 = vmatprep.subr.bf16.mxu0 0
    %782 = vmatpush1.bf16.msra.mxu0 0
    %783 = vmatprep.subr.bf16.mxu0 0
    %784 = vmatpush1.bf16.msra.mxu0 0
    %785 = vmatprep.subr.bf16.mxu0 0
    %786 = vmatpush1.bf16.msra.mxu0 0
    %787 = vmatprep.subr.bf16.mxu0 0
    %788 = vmatpush1.bf16.msra.mxu0 0
    %789 = vmatprep.subr.bf16.mxu0 0
    %790 = vmatpush1.bf16.msra.mxu0 0
    %791 = vmatprep.subr.bf16.mxu0 0
    %792 = vmatpush1.bf16.msra.mxu0 0
    %793 = vmatprep.subr.bf16.mxu0 0
    %794 = vmatpush1.bf16.msra.mxu0 0
    %795 = vmatprep.subr.bf16.mxu0 0
    %796 = vmatpush1.bf16.msra.mxu0 0
    %797 = vmatprep.subr.bf16.mxu0 0
    %798 = vmatpush1.bf16.msra.mxu0 0
    %799 = vmatprep.subr.bf16.mxu0 0
    %800 = vmatpush1.bf16.msra.mxu0 0
    %801 = vmatprep.subr.bf16.mxu0 0
    %802 = vmatpush1.bf16.msra.mxu0 0
    %803 = vmatprep.subr.bf16.mxu0 0
    %804 = vmatpush1.bf16.msra.mxu0 0
    %805 = vmatprep.mubr.bf16.mxu0 0
    %806 = vmatmul.mubr.bf16.gmra.mrb[0].mxu0 %v768
    %v807 = vpop.f32.mrb[0].mxu0
    %v808 = vadd.f32 0.0, %v807
    %v809 = vpop.f32.mrb[0].mxu0
    %v810 = vpop.f32.mrb[0].mxu0
    %v811 = vpop.f32.mrb[0].mxu0
    %812 = vdwg.mxu0
    %813 = vrot.lane.b32.xlu0 %v317, 64
    %v814 = vpop.permute.xlu0 %813
    %v816 = vsel %vm121, %v616, 0
    %v819 = vsel %vm625, %v814, 0
    %821 = vmatprep.subr.bf16.mxu0 0
    %822 = vmatpush1.bf16.msra.mxu0 %v819
    %823 = vmatprep.subr.bf16.mxu0 0
    %824 = vmatpush1.bf16.msra.mxu0 0
    %825 = vmatprep.subr.bf16.mxu0 0
    %826 = vmatpush1.bf16.msra.mxu0 0
    %827 = vmatprep.subr.bf16.mxu0 0
    %828 = vmatpush1.bf16.msra.mxu0 0
    %829 = vmatprep.subr.bf16.mxu0 0
    %830 = vmatpush1.bf16.msra.mxu0 0
    %831 = vmatprep.subr.bf16.mxu0 0
    %832 = vmatpush1.bf16.msra.mxu0 0
    %833 = vmatprep.subr.bf16.mxu0 0
    %834 = vmatpush1.bf16.msra.mxu0 0
    %835 = vmatprep.subr.bf16.mxu0 0
    %836 = vmatpush1.bf16.msra.mxu0 0
    %837 = vmatprep.subr.bf16.mxu0 0
    %838 = vmatpush1.bf16.msra.mxu0 0
    %839 = vmatprep.subr.bf16.mxu0 0
    %840 = vmatpush1.bf16.msra.mxu0 0
    %841 = vmatprep.subr.bf16.mxu0 0
    %842 = vmatpush1.bf16.msra.mxu0 0
    %843 = vmatprep.subr.bf16.mxu0 0
    %844 = vmatpush1.bf16.msra.mxu0 0
    %845 = vmatprep.subr.bf16.mxu0 0
    %846 = vmatpush1.bf16.msra.mxu0 0
    %847 = vmatprep.subr.bf16.mxu0 0
    %848 = vmatpush1.bf16.msra.mxu0 0
    %849 = vmatprep.subr.bf16.mxu0 0
    %850 = vmatpush1.bf16.msra.mxu0 0
    %851 = vmatprep.subr.bf16.mxu0 0
    %852 = vmatpush1.bf16.msra.mxu0 0
    %853 = vmatprep.mubr.bf16.mxu0 0
    %854 = vmatmul.mubr.bf16.gmra.mrb[0].mxu0 %v816
    %v855 = vpop.f32.mrb[0].mxu0
    %v856 = vadd.f32 0.0, %v855
    %v857 = vpop.f32.mrb[0].mxu0
    %v858 = vpop.f32.mrb[0].mxu0
    %v859 = vpop.f32.mrb[0].mxu0
    %860 = vdwg.mxu0
    %861 = vrot.lane.b32.xlu0 %v367, 64
    %v862 = vpop.permute.xlu0 %861
    %v864 = vsel %vm121, %v617, 0
    %v867 = vsel %vm625, %v862, 0
    %869 = vmatprep.subr.bf16.mxu0 0
    %870 = vmatpush1.bf16.msra.mxu0 %v867
    %871 = vmatprep.subr.bf16.mxu0 0
    %872 = vmatpush1.bf16.msra.mxu0 0
    %873 = vmatprep.subr.bf16.mxu0 0
    %874 = vmatpush1.bf16.msra.mxu0 0
    %875 = vmatprep.subr.bf16.mxu0 0
    %876 = vmatpush1.bf16.msra.mxu0 0
    %877 = vmatprep.subr.bf16.mxu0 0
    %878 = vmatpush1.bf16.msra.mxu0 0
    %879 = vmatprep.subr.bf16.mxu0 0
    %880 = vmatpush1.bf16.msra.mxu0 0
    %881 = vmatprep.subr.bf16.mxu0 0
    %882 = vmatpush1.bf16.msra.mxu0 0
    %883 = vmatprep.subr.bf16.mxu0 0
    %884 = vmatpush1.bf16.msra.mxu0 0
    %885 = vmatprep.subr.bf16.mxu0 0
    %886 = vmatpush1.bf16.msra.mxu0 0
    %887 = vmatprep.subr.bf16.mxu0 0
    %888 = vmatpush1.bf16.msra.mxu0 0
    %889 = vmatprep.subr.bf16.mxu0 0
    %890 = vmatpush1.bf16.msra.mxu0 0
    %891 = vmatprep.subr.bf16.mxu0 0
    %892 = vmatpush1.bf16.msra.mxu0 0
    %893 = vmatprep.subr.bf16.mxu0 0
    %894 = vmatpush1.bf16.msra.mxu0 0
    %895 = vmatprep.subr.bf16.mxu0 0
    %896 = vmatpush1.bf16.msra.mxu0 0
    %897 = vmatprep.subr.bf16.mxu0 0
    %898 = vmatpush1.bf16.msra.mxu0 0
    %899 = vmatprep.subr.bf16.mxu0 0
    %900 = vmatpush1.bf16.msra.mxu0 0
    %901 = vmatprep.mubr.bf16.mxu0 0
    %902 = vmatmul.mubr.bf16.gmra.mrb[0].mxu0 %v864
    %v903 = vpop.f32.mrb[0].mxu0
    %v904 = vadd.f32 0.0, %v903
    %v905 = vpop.f32.mrb[0].mxu0
    %v906 = vpop.f32.mrb[0].mxu0
    %v907 = vpop.f32.mrb[0].mxu0
    %908 = vdwg.mxu0
    %909 = vrot.lane.b32.xlu0 %v417, 64
    %v910 = vpop.permute.xlu0 %909
    %v912 = vsel %vm121, %v618, 0
    %v915 = vsel %vm625, %v910, 0
    %917 = vmatprep.subr.bf16.mxu0 0
    %918 = vmatpush1.bf16.msra.mxu0 %v915
    %919 = vmatprep.subr.bf16.mxu0 0
    %920 = vmatpush1.bf16.msra.mxu0 0
    %921 = vmatprep.subr.bf16.mxu0 0
    %922 = vmatpush1.bf16.msra.mxu0 0
    %923 = vmatprep.subr.bf16.mxu0 0
    %924 = vmatpush1.bf16.msra.mxu0 0
    %925 = vmatprep.subr.bf16.mxu0 0
    %926 = vmatpush1.bf16.msra.mxu0 0
    %927 = vmatprep.subr.bf16.mxu0 0
    %928 = vmatpush1.bf16.msra.mxu0 0
    %929 = vmatprep.subr.bf16.mxu0 0
    %930 = vmatpush1.bf16.msra.mxu0 0
    %931 = vmatprep.subr.bf16.mxu0 0
    %932 = vmatpush1.bf16.msra.mxu0 0
    %933 = vmatprep.subr.bf16.mxu0 0
    %934 = vmatpush1.bf16.msra.mxu0 0
    %935 = vmatprep.subr.bf16.mxu0 0
    %936 = vmatpush1.bf16.msra.mxu0 0
    %937 = vmatprep.subr.bf16.mxu0 0
    %938 = vmatpush1.bf16.msra.mxu0 0
    %939 = vmatprep.subr.bf16.mxu0 0
    %940 = vmatpush1.bf16.msra.mxu0 0
    %941 = vmatprep.subr.bf16.mxu0 0
    %942 = vmatpush1.bf16.msra.mxu0 0
    %943 = vmatprep.subr.bf16.mxu0 0
    %944 = vmatpush1.bf16.msra.mxu0 0
    %945 = vmatprep.subr.bf16.mxu0 0
    %946 = vmatpush1.bf16.msra.mxu0 0
    %947 = vmatprep.subr.bf16.mxu0 0
    %948 = vmatpush1.bf16.msra.mxu0 0
    %949 = vmatprep.mubr.bf16.mxu0 0
    %950 = vmatmul.mubr.bf16.gmra.mrb[0].mxu0 %v912
    %v951 = vpop.f32.mrb[0].mxu0
    %v952 = vadd.f32 0.0, %v951
    %v953 = vpop.f32.mrb[0].mxu0
    %v954 = vpop.f32.mrb[0].mxu0
    %v955 = vpop.f32.mrb[0].mxu0
    %956 = vdwg.mxu0
    %957 = vrot.lane.b32.xlu0 %v467, 64
    %v958 = vpop.permute.xlu0 %957
    %v960 = vsel %vm121, %v619, 0
    %v963 = vsel %vm625, %v958, 0
    %965 = vmatprep.subr.bf16.mxu0 0
    %966 = vmatpush1.bf16.msra.mxu0 %v963
    %967 = vmatprep.subr.bf16.mxu0 0
    %968 = vmatpush1.bf16.msra.mxu0 0
    %969 = vmatprep.subr.bf16.mxu0 0
    %970 = vmatpush1.bf16.msra.mxu0 0
    %971 = vmatprep.subr.bf16.mxu0 0
    %972 = vmatpush1.bf16.msra.mxu0 0
    %973 = vmatprep.subr.bf16.mxu0 0
    %974 = vmatpush1.bf16.msra.mxu0 0
    %975 = vmatprep.subr.bf16.mxu0 0
    %976 = vmatpush1.bf16.msra.mxu0 0
    %977 = vmatprep.subr.bf16.mxu0 0
    %978 = vmatpush1.bf16.msra.mxu0 0
    %979 = vmatprep.subr.bf16.mxu0 0
    %980 = vmatpush1.bf16.msra.mxu0 0
    %981 = vmatprep.subr.bf16.mxu0 0
    %982 = vmatpush1.bf16.msra.mxu0 0
    %983 = vmatprep.subr.bf16.mxu0 0
    %984 = vmatpush1.bf16.msra.mxu0 0
    %985 = vmatprep.subr.bf16.mxu0 0
    %986 = vmatpush1.bf16.msra.mxu0 0
    %987 = vmatprep.subr.bf16.mxu0 0
    %988 = vmatpush1.bf16.msra.mxu0 0
    %989 = vmatprep.subr.bf16.mxu0 0
    %990 = vmatpush1.bf16.msra.mxu0 0
    %991 = vmatprep.subr.bf16.mxu0 0
    %992 = vmatpush1.bf16.msra.mxu0 0
    %993 = vmatprep.subr.bf16.mxu0 0
    %994 = vmatpush1.bf16.msra.mxu0 0
    %995 = vmatprep.subr.bf16.mxu0 0
    %996 = vmatpush1.bf16.msra.mxu0 0
    %997 = vmatprep.mubr.bf16.mxu0 0
    %998 = vmatmul.mubr.bf16.gmra.mrb[0].mxu0 %v960
    %v999 = vpop.f32.mrb[0].mxu0
    %v1000 = vadd.f32 0.0, %v999
    %v1001 = vpop.f32.mrb[0].mxu0
    %v1002 = vpop.f32.mrb[0].mxu0
    %v1003 = vpop.f32.mrb[0].mxu0
    %1004 = vdwg.mxu0
    %1007 = vrot.lane.b32.xlu0 %v760, 8
    %v1008 = vpop.permute.xlu0 %1007
    %1009 = vrot.lane.b32.xlu0 %v808, 8
    %v1010 = vpop.permute.xlu0 %1009
    %1015 = vrot.lane.b32.xlu0 %v856, 16
    %v1016 = vpop.permute.xlu0 %1015
    %1017 = vrot.lane.b32.xlu0 %v904, 16
    %v1018 = vpop.permute.xlu0 %1017
    %1023 = vrot.lane.b32.xlu0 %v952, 24
    %v1024 = vpop.permute.xlu0 %1023
    %1025 = vrot.lane.b32.xlu0 %v1000, 24
    %v1026 = vpop.permute.xlu0 %1025
    %v1029 = vsel %vm121, %v664, %v1008
    %v1030 = vsel %vm121, %v712, %v1010
    %vm1031 = vcmask 130048
    %v1032 = vsel %vm1031, %v1029, %v1016
    %v1033 = vsel %vm1031, %v1030, %v1018
    %vm1034 = vcmask 195584
    %v1035 = vsel %vm1034, %v1032, %v1024
    %v1036 = vsel %vm1034, %v1033, %v1026
    %v1037 = vpack.c.bf16 %v1036, %v1035
    %v1042 = vunpack.c.l.b16 %v22
    %v1043 = vunpack.c.l.b16 %v23
    %v1044 = vunpack.c.l.b16 %v24
    %v1045 = vunpack.c.l.b16 %v25
    %v1046 = vpack.c.b16 %v1043, %v1042
    %v1047 = vpack.c.b16 %v1045, %v1044
    %1051 = vrot.lane.b32.xlu0 %v43, 32
    %v1052 = vpop.permute.xlu0 %1051
    %v1055 = vsel %vm56, %v1037, 0
    %1057 = vmatprep.subr.bf16.mxu0 0
    %1058 = vmatpush1.bf16.msra.mxu0 %v1046
    %1059 = vmatprep.subr.bf16.mxu0 0
    %1060 = vmatpush1.bf16.msra.mxu0 %v1047
    %1061 = vmatprep.subr.bf16.mxu0 0
    %1062 = vmatpush1.bf16.msra.mxu0 0
    %1063 = vmatprep.subr.bf16.mxu0 0
    %1064 = vmatpush1.bf16.msra.mxu0 0
    %1065 = vmatprep.subr.bf16.mxu0 0
    %1066 = vmatpush1.bf16.msra.mxu0 0
    %1067 = vmatprep.subr.bf16.mxu0 0
    %1068 = vmatpush1.bf16.msra.mxu0 0
    %1069 = vmatprep.subr.bf16.mxu0 0
    %1070 = vmatpush1.bf16.msra.mxu0 0
    %1071 = vmatprep.subr.bf16.mxu0 0
    %1072 = vmatpush1.bf16.msra.mxu0 0
    %1073 = vmatprep.subr.bf16.mxu0 0
    %1074 = vmatpush1.bf16.msra.mxu0 0
    %1075 = vmatprep.subr.bf16.mxu0 0
    %1076 = vmatpush1.bf16.msra.mxu0 0
    %1077 = vmatprep.subr.bf16.mxu0 0
    %1078 = vmatpush1.bf16.msra.mxu0 0
    %1079 = vmatprep.subr.bf16.mxu0 0
    %1080 = vmatpush1.bf16.msra.mxu0 0
    %1081 = vmatprep.subr.bf16.mxu0 0
    %1082 = vmatpush1.bf16.msra.mxu0 0
    %1083 = vmatprep.subr.bf16.mxu0 0
    %1084 = vmatpush1.bf16.msra.mxu0 0
    %1085 = vmatprep.subr.bf16.mxu0 0
    %1086 = vmatpush1.bf16.msra.mxu0 0
    %1087 = vmatprep.subr.bf16.mxu0 0
    %1088 = vmatpush1.bf16.msra.mxu0 0
    %1089 = vmatprep.mubr.bf16.mxu0 0
    %1090 = vmatmul.mubr.bf16.gmra.mrb[0].mxu0 %v1055
    %v1091 = vpop.f32.mrb[0].mxu0
    %v1092 = vadd.f32 %v1052, %v1091
    %v1093 = vpop.f32.mrb[0].mxu0
    %v1094 = vpop.f32.mrb[0].mxu0
    %v1095 = vadd.f32 %v1052, %v1094
    %v1096 = vpop.f32.mrb[0].mxu0
    %1097 = vdwg.mxu0
    %v1098 = vadd.f32 %v16, %v1092
    %v1099 = vadd.f32 %v17, %v1095
    %v1100 = vsel %vm56, %v1098, 0.0
    %1101 = vadd.xlane.f32.xlu0 %v1100
    %v1102 = vpop.xlane.xlu0 %1101
    %v1103 = vsel %vm56, %v1099, 0.0
    %1104 = vadd.xlane.f32.xlu0 %v1103
    %v1105 = vpop.xlane.xlu0 %1104
    %v1106 = vrcp.pop 32.0
    %v1107 = vmul.f32 %v1102, %v1106
    %v1108 = vmul.f32 %v1105, %v1106
    %v1109 = vsub.f32 %v1098, %v1107
    %v1110 = vsub.f32 %v1099, %v1108
    %v1111 = vmul.f32 %v1109, %v1109
    %v1112 = vmul.f32 %v1110, %v1110
    %v1113 = vsel %vm56, %v1111, 0.0
    %1114 = vadd.xlane.f32.xlu0 %v1113
    %v1115 = vpop.xlane.xlu0 %1114
    %v1116 = vsel %vm56, %v1112, 0.0
    %1117 = vadd.xlane.f32.xlu0 %v1116
    %v1118 = vpop.xlane.xlu0 %1117
    %v1119 = vmul.f32 %v1115, %v1106
    %v1120 = vmul.f32 %v1118, %v1106
    %v1121 = vadd.f32 %v1119, 1e-05
    %v1122 = vadd.f32 %v1120, 1e-05
    %v1123 = vrsqrt.pop %v1121
    %v1124 = vrsqrt.pop %v1122
    %v1125 = vmul.f32 %v1109, %v1123
    %v1126 = vmul.f32 %v1110, %v1124
    %v1127 = vlaneseq
    %v1128 = vshrl.u32 %v1127, 7
    %v1129 = vsub.s32 2, %v1128
    %v1130 = vrot.slane %v38, %v1129
    %v1131 = vmul.f32 %v1125, %v1130
    %v1132 = vmul.f32 %v1126, %v1130
    %1134 = vrot.lane.b32.xlu0 %v1130, 96
    %v1135 = vpop.permute.xlu0 %1134
    %v1137 = vadd.f32 %v1131, %v1135
    %v1138 = vadd.f32 %v1132, %v1135
    %v1139 = vpack.c.bf16 %v1138, %v1137
    %v1140 = vlaneseq
    %v1141 = vshrl.u32 %v1140, 7
    %v1142 = vsub.s32 1, %v1141
    %v1143 = vrot.slane %v38, %v1142
    %v1148 = vunpack.c.l.b16 %v26
    %v1149 = vunpack.c.l.b16 %v27
    %v1150 = vunpack.c.l.b16 %v28
    %v1151 = vunpack.c.l.b16 %v29
    %v1152 = vpack.c.b16 %v1149, %v1148
    %v1153 = vpack.c.b16 %v1151, %v1150
    %v1157 = vsel %vm56, %v1139, 0
    %1159 = vmatprep.subr.bf16.mxu0 0
    %1160 = vmatpush1.bf16.msra.mxu0 %v1152
    %1161 = vmatprep.subr.bf16.mxu0 0
    %1162 = vmatpush1.bf16.msra.mxu0 %v1153
    %1163 = vmatprep.subr.bf16.mxu0 0
    %1164 = vmatpush1.bf16.msra.mxu0 0
    %1165 = vmatprep.subr.bf16.mxu0 0
    %1166 = vmatpush1.bf16.msra.mxu0 0
    %1167 = vmatprep.subr.bf16.mxu0 0
    %1168 = vmatpush1.bf16.msra.mxu0 0
    %1169 = vmatprep.subr.bf16.mxu0 0
    %1170 = vmatpush1.bf16.msra.mxu0 0
    %1171 = vmatprep.subr.bf16.mxu0 0
    %1172 = vmatpush1.bf16.msra.mxu0 0
    %1173 = vmatprep.subr.bf16.mxu0 0
    %1174 = vmatpush1.bf16.msra.mxu0 0
    %1175 = vmatprep.subr.bf16.mxu0 0
    %1176 = vmatpush1.bf16.msra.mxu0 0
    %1177 = vmatprep.subr.bf16.mxu0 0
    %1178 = vmatpush1.bf16.msra.mxu0 0
    %1179 = vmatprep.subr.bf16.mxu0 0
    %1180 = vmatpush1.bf16.msra.mxu0 0
    %1181 = vmatprep.subr.bf16.mxu0 0
    %1182 = vmatpush1.bf16.msra.mxu0 0
    %1183 = vmatprep.subr.bf16.mxu0 0
    %1184 = vmatpush1.bf16.msra.mxu0 0
    %1185 = vmatprep.subr.bf16.mxu0 0
    %1186 = vmatpush1.bf16.msra.mxu0 0
    %1187 = vmatprep.subr.bf16.mxu0 0
    %1188 = vmatpush1.bf16.msra.mxu0 0
    %1189 = vmatprep.subr.bf16.mxu0 0
    %1190 = vmatpush1.bf16.msra.mxu0 0
    %1191 = vmatprep.mubr.bf16.mxu0 0
    %1192 = vmatmul.mubr.bf16.gmra.mrb[0].mxu0 %v1157
    %v1193 = vpop.f32.mrb[0].mxu0
    %v1194 = vadd.f32 %v1143, %v1193
    %v1195 = vpop.f32.mrb[0].mxu0
    %v1196 = vpop.f32.mrb[0].mxu0
    %v1197 = vadd.f32 %v1143, %v1196
    %v1198 = vpop.f32.mrb[0].mxu0
    %1199 = vdwg.mxu0
    %v1200 = vmax.f32 %v1194, 0.0
    %v1201 = vmax.f32 %v1197, 0.0
    %v1202 = vpack.c.bf16 %v1201, %v1200
    %v1211 = vunpack.c.l.b16 %v30
    %v1212 = vunpack.c.l.b16 %v31
    %v1213 = vunpack.c.l.b16 %v32
    %v1214 = vunpack.c.l.b16 %v33
    %v1215 = vunpack.c.l.b16 %v34
    %v1216 = vunpack.c.l.b16 %v35
    %v1217 = vunpack.c.l.b16 %v36
    %v1218 = vunpack.c.l.b16 %v37
    %v1219 = vpack.c.b16 %v1212, %v1211
    %v1220 = vpack.c.b16 %v1214, %v1213
    %v1221 = vpack.c.b16 %v1216, %v1215
    %v1222 = vpack.c.b16 %v1218, %v1217
    %1228 = vrot.lane.b32.xlu0 %v1143, 64
    %v1229 = vpop.permute.xlu0 %1228
    %vm1231 = vcmask 523264
    %v1233 = vsel %vm1231, %v1202, 0
    %1235 = vmatprep.subr.bf16.mxu0 0
    %1236 = vmatpush1.bf16.msra.mxu0 %v1219
    %1237 = vmatprep.subr.bf16.mxu0 0
    %1238 = vmatpush1.bf16.msra.mxu0 %v1220
    %1239 = vmatprep.subr.bf16.mxu0 0
    %1240 = vmatpush1.bf16.msra.mxu0 %v1221
    %1241 = vmatprep.subr.bf16.mxu0 0
    %1242 = vmatpush1.bf16.msra.mxu0 %v1222
    %1243 = vmatprep.subr.bf16.mxu0 0
    %1244 = vmatpush1.bf16.msra.mxu0 0
    %1245 = vmatprep.subr.bf16.mxu0 0
    %1246 = vmatpush1.bf16.msra.mxu0 0
    %1247 = vmatprep.subr.bf16.mxu0 0
    %1248 = vmatpush1.bf16.msra.mxu0 0
    %1249 = vmatprep.subr.bf16.mxu0 0
    %1250 = vmatpush1.bf16.msra.mxu0 0
    %1251 = vmatprep.subr.bf16.mxu0 0
    %1252 = vmatpush1.bf16.msra.mxu0 0
    %1253 = vmatprep.subr.bf16.mxu0 0
    %1254 = vmatpush1.bf16.msra.mxu0 0
    %1255 = vmatprep.subr.bf16.mxu0 0
    %1256 = vmatpush1.bf16.msra.mxu0 0
    %1257 = vmatprep.subr.bf16.mxu0 0
    %1258 = vmatpush1.bf16.msra.mxu0 0
    %1259 = vmatprep.subr.bf16.mxu0 0
    %1260 = vmatpush1.bf16.msra.mxu0 0
    %1261 = vmatprep.subr.bf16.mxu0 0
    %1262 = vmatpush1.bf16.msra.mxu0 0
    %1263 = vmatprep.subr.bf16.mxu0 0
    %1264 = vmatpush1.bf16.msra.mxu0 0
    %1265 = vmatprep.subr.bf16.mxu0 0
    %1266 = vmatpush1.bf16.msra.mxu0 0
    %1267 = vmatprep.mubr.bf16.mxu0 0
    %1268 = vmatmul.mubr.bf16.gmra.mrb[0].mxu0 %v1233
    %v1269 = vpop.f32.mrb[0].mxu0
    %v1270 = vadd.f32 %v1229, %v1269
    %v1271 = vpop.f32.mrb[0].mxu0
    %v1272 = vpop.f32.mrb[0].mxu0
    %v1273 = vadd.f32 %v1229, %v1272
    %v1274 = vpop.f32.mrb[0].mxu0
    %1275 = vdwg.mxu0
    %v1276 = vadd.f32 %v1137, %v1270
    %v1277 = vadd.f32 %v1138, %v1273
    %v1278 = vsel %vm56, %v1276, 0.0
    %1279 = vadd.xlane.f32.xlu0 %v1278
    %v1280 = vpop.xlane.xlu0 %1279
    %v1281 = vsel %vm56, %v1277, 0.0
    %1282 = vadd.xlane.f32.xlu0 %v1281
    %v1283 = vpop.xlane.xlu0 %1282
    %v1284 = vmul.f32 %v1280, %v1106
    %v1285 = vmul.f32 %v1283, %v1106
    %v1286 = vsub.f32 %v1276, %v1284
    %v1287 = vsub.f32 %v1277, %v1285
    %v1288 = vmul.f32 %v1286, %v1286
    %v1289 = vmul.f32 %v1287, %v1287
    %v1290 = vsel %vm56, %v1288, 0.0
    %1291 = vadd.xlane.f32.xlu0 %v1290
    %v1292 = vpop.xlane.xlu0 %1291
    %v1293 = vsel %vm56, %v1289, 0.0
    %1294 = vadd.xlane.f32.xlu0 %v1293
    %v1295 = vpop.xlane.xlu0 %1294
    %v1296 = vmul.f32 %v1292, %v1106
    %v1297 = vmul.f32 %v1295, %v1106
    %v1298 = vadd.f32 %v1296, 1e-05
    %v1299 = vadd.f32 %v1297, 1e-05
    %v1300 = vrsqrt.pop %v1298
    %v1301 = vrsqrt.pop %v1299
    %v1302 = vmul.f32 %v1286, %v1300
    %v1303 = vmul.f32 %v1287, %v1301
    %1304 = vrot.lane.b32.xlu0 %v1130, 64
    %v1305 = vpop.permute.xlu0 %1304
    %v1307 = vmul.f32 %v1302, %v1305
    %v1308 = vmul.f32 %v1303, %v1305
    %1309 = vrot.lane.b32.xlu0 %v1130, 32
    %v1310 = vpop.permute.xlu0 %1309
    %v1312 = vadd.f32 %v1307, %v1310
    %v1313 = vadd.f32 %v1308, %v1310
    %1314 = vst.msk [vmem:[#allocation2] sm:$0xff] %vm56, %v1312
    %1315 = vst.msk [vmem:[#allocation2 + $0x8] sm:$0xff] %vm56, %v1313
    // Predicated region
    $region14: #{encoder_layer.1} parent=1 // pred_check
      _
    $region15: #{encoder_layer.1} parent=1 // pred_check_branch
      %1317 = sbr.rel (0) target = $region17
    $region16: #{encoder_layer.1} parent=1 // pred_region
      %s1319 = ssub.s32 256, 256
      %1320 = vsyncadd [#allocation3], %s1319
      %s1321 = sshll.u32 [#allocation2], 4
      %s1322 = int_to_ptr.vmem [resolvable:$true] %s1321
      %1327 = dma.vmem_to_hbm [thread:$0]  %s1322, 256, %s3, [#allocation3], 128, 128, 8
    $region17: #{encoder_layer.1} parent=1 // pred_fallthru
      _
    // Predicated region
    $region18: #{encoder_layer.1} parent=1 // pred_check
      _
    $region19: #{encoder_layer.1} parent=1 // pred_check_branch
      %1329 = sbr.rel (0) target = $region21
    $region20: #{encoder_layer.1} parent=1 // pred_region
      %1330 = dma.done [#allocation3], 256
    $region21: #{encoder_layer.1} parent=1 // pred_fallthru
      _
    %1331 = vsyncpa [#allocation3], 1

</llo_original>
